<compile_context>
chip_gen: v7x
topology: tpu7x:2x2x1
jax: 0.10.0
libtpu: 0.0.40
codegen_flags: <defaults>
</compile_context>

<pallas_src>
import math
from functools import partial

import jax
import jax.numpy as jnp
from jax.experimental import pallas as pl
from jax.experimental.pallas import tpu as pltpu


def dqn_kernel(x_ref, w1_ref, b1_ref, w2_ref, b2_ref, w3_ref, b3_ref,
               w4_ref, b4_ref, o_ref):
    # Layer 1: Linear(in_size, 256) + ReLU — f32 operands (keeps input precision;
    # K is tiny so the extra MXU passes are irrelevant).
    h = jnp.dot(x_ref[...], w1_ref[...], preferred_element_type=jnp.float32)
    h = jnp.maximum(h + b1_ref[...], 0.0)
    # Layer 2: Linear(256, 256) + ReLU — bf16 operands, f32 accumulate.
    h = jnp.dot(h.astype(jnp.bfloat16), w2_ref[...],
                preferred_element_type=jnp.float32)
    h = jnp.maximum(h + b2_ref[...], 0.0)
    # Layer 3: Linear(256, 128) + ReLU.
    h = jnp.dot(h.astype(jnp.bfloat16), w3_ref[...],
                preferred_element_type=jnp.float32)
    h = jnp.maximum(h + b3_ref[...], 0.0)
    # Layer 4: Linear(128, out_pad)  (no activation; lane-dense 128-wide store).
    h = jnp.dot(h.astype(jnp.bfloat16), w4_ref[...],
                preferred_element_type=jnp.float32)
    o_ref[...] = (h + b4_ref[...]).astype(o_ref.dtype)


def _round_up(n, m):
    return ((n + m - 1) // m) * m


def pack_dqn_params(params):
    """Pre-pack weights once: bf16 for layers 2-4, layer-4 padded to 128 lanes.

    Returns a tuple of arrays ready to be passed straight into dqn_forward on
    every call (no per-call HBM re-pack passes).
    """
    (w1, b1), (w2, b2), (w3, b3), (w4, b4) = params
    out_size = w4.shape[1]
    out_pad = _round_up(max(out_size, 128), 128)

    w4p = jnp.zeros((w4.shape[0], out_pad), jnp.bfloat16)
    w4p = w4p.at[:, :out_size].set(w4.astype(jnp.bfloat16))
    b4p = jnp.zeros((1, out_pad), jnp.float32)
    b4p = b4p.at[0, :out_size].set(b4.astype(jnp.float32))

    return (w1.astype(jnp.float32), b1[None, :].astype(jnp.float32),
            w2.astype(jnp.bfloat16), b2[None, :].astype(jnp.float32),
            w3.astype(jnp.bfloat16), b3[None, :].astype(jnp.float32),
            w4p, b4p)


def _pick_b_tile(B):
    """Large tile to amortize ~0.35us/step overhead, but >=2 grid steps when
    the batch allows it so v7x's 2 TensorCores both get a share."""
    b_pad128 = _round_up(max(B, 128), 128)
    half = (b_pad128 // 2 // 128) * 128
    return min(1024, max(128, half))


@partial(jax.jit, static_argnames=("out_size",))
def dqn_forward(x, packed, *, out_size):
    """x: (B, in_size) float32; packed: output of pack_dqn_params."""
    w1, b1, w2, b2, w3, b3, w4p, b4p = packed
    B, in_size = x.shape
    h1, h2, h3 = w1.shape[1], w2.shape[1], w3.shape[1]   # 256, 256, 128
    out_pad = w4p.shape[1]

    b_tile = _pick_b_tile(B)
    b_pad = _round_up(max(B, b_tile), b_tile)
    if b_pad != B:
        x = jnp.pad(x, ((0, b_pad - B), (0, 0)))   # fuses under jit

    grid = (b_pad // b_tile,)
    const = lambda i: (0, 0)   # weights/biases: one block, resident across grid

    in_specs = [
        pl.BlockSpec((b_tile, in_size), lambda i: (i, 0)),  # x tile streams
        pl.BlockSpec((in_size, h1), const),                 # w1 (f32)
        pl.BlockSpec((1, h1), const),                       # b1
        pl.BlockSpec((h1, h2), const),                      # w2 (bf16)
        pl.BlockSpec((1, h2), const),                       # b2
        pl.BlockSpec((h2, h3), const),                      # w3 (bf16)
        pl.BlockSpec((1, h3), const),                       # b3
        pl.BlockSpec((h3, out_pad), const),                 # w4 (bf16, padded cols)
        pl.BlockSpec((1, out_pad), const),                  # b4 (padded)
    ]
    out_specs = pl.BlockSpec((b_tile, out_pad), lambda i: (i, 0))

    out = pl.pallas_call(
        dqn_kernel,
        out_shape=jax.ShapeDtypeStruct((b_pad, out_pad), jnp.bfloat16),
        grid=grid,
        in_specs=in_specs,
        out_specs=out_specs,
        compiler_params=pltpu.CompilerParams(
            dimension_semantics=("parallel",),   # shard batch tiles over TCs (v7x)
            vmem_limit_bytes=32 * 1024 * 1024),
    )(x, w1, b1, w2, b2, w3, b3, w4p, b4p)

    # Slice off padded rows/lanes and restore f32 Q-values; fuses under jit.
    return out[:B, :out_size].astype(jnp.float32)


def init_dqn_params(key, input_size, output_size):
    """Kaiming-normal (fan_in, relu) weights, zero biases — matches _init_weights.

    Weights stored (in_features, out_features) so y = x @ W + b == PyTorch x @ W.T.
    """
    dims = [(input_size, 256), (256, 256), (256, 128), (128, output_size)]
    params = []
    for (fan_in, fan_out) in dims:
        key, wk = jax.random.split(key)
        std = math.sqrt(2.0 / fan_in)
        w = jax.random.normal(wk, (fan_in, fan_out), dtype=jnp.float32) * std
        b = jnp.zeros((fan_out,), dtype=jnp.float32)
        params.append((w, b))
    return params


def dqn_reference(x, params):
    h = x
    for i, (w, b) in enumerate(params):
        h = h @ w + b
        if i < len(params) - 1:
            h = jnp.maximum(h, 0.0)
    return h


if __name__ == "__main__":
    key = jax.random.PRNGKey(0)
    input_size = 32
    output_size = 4
    batch = 256          # 2 grid steps at the adaptive tile -> exercises pipeline + megacore

    pkey, xkey = jax.random.split(key)
    params = init_dqn_params(pkey, input_size, output_size)
    packed = pack_dqn_params(params)   # one-time pack; reused across calls
    x = jax.random.normal(xkey, (batch, input_size), dtype=jnp.float32)

    out = dqn_forward(x, packed, out_size=output_size)
    out = jax.block_until_ready(out)

    ref = dqn_reference(x, params)
    assert out.shape == (batch, output_size)
    # bf16 operands in layers 2-4 + bf16 output slab -> loosened relative tolerance.
    err = float(jnp.max(jnp.abs(out - ref)))
    scale = float(jnp.max(jnp.abs(ref))) + 1e-6
    assert err / scale < 2e-2, f"max rel err {err / scale:.4e}"

    print("KERNEL_OK")
</pallas_src>

<mosaic_0001>
module attributes {stable_mosaic.version = 11 : i64} {
  func.func @dqn_kernel(%arg0: i32, %arg1: memref<128x32xf32, #tpu.memory_space<vmem>>, %arg2: memref<32x256xf32, #tpu.memory_space<vmem>>, %arg3: memref<1x256xf32, #tpu.memory_space<vmem>>, %arg4: memref<256x256xbf16, #tpu.memory_space<vmem>>, %arg5: memref<1x256xf32, #tpu.memory_space<vmem>>, %arg6: memref<256x128xbf16, #tpu.memory_space<vmem>>, %arg7: memref<1x128xf32, #tpu.memory_space<vmem>>, %arg8: memref<128x128xbf16, #tpu.memory_space<vmem>>, %arg9: memref<1x128xf32, #tpu.memory_space<vmem>>, %arg10: memref<128x128xbf16, #tpu.memory_space<vmem>>) attributes {dimension_semantics = [#tpu.dimension_semantics<parallel>], iteration_bounds = array<i64: 2>, scalar_prefetch = 0 : i64, scratch_operands = 0 : i64, tpu.core_type = #tpu.core_type<tc>, window_params = [{transform_indices = @transform_0, window_bounds = array<i64: 128, 32>}, {pipeline_mode = #tpu.pipeline_mode<synchronous>, transform_indices = @transform_1, window_bounds = array<i64: 32, 256>}, {pipeline_mode = #tpu.pipeline_mode<synchronous>, transform_indices = @transform_2, window_bounds = array<i64: 1, 256>}, {pipeline_mode = #tpu.pipeline_mode<synchronous>, transform_indices = @transform_3, window_bounds = array<i64: 256, 256>}, {pipeline_mode = #tpu.pipeline_mode<synchronous>, transform_indices = @transform_4, window_bounds = array<i64: 1, 256>}, {pipeline_mode = #tpu.pipeline_mode<synchronous>, transform_indices = @transform_5, window_bounds = array<i64: 256, 128>}, {pipeline_mode = #tpu.pipeline_mode<synchronous>, transform_indices = @transform_6, window_bounds = array<i64: 1, 128>}, {pipeline_mode = #tpu.pipeline_mode<synchronous>, transform_indices = @transform_7, window_bounds = array<i64: 128, 128>}, {pipeline_mode = #tpu.pipeline_mode<synchronous>, transform_indices = @transform_8, window_bounds = array<i64: 1, 128>}, {transform_indices = @transform_9, window_bounds = array<i64: 128, 128>}]} {
    %c0 = arith.constant 0 : index
    %c0_0 = arith.constant 0 : index
    %0 = vector.load %arg1[%c0, %c0_0] : memref<128x32xf32, #tpu.memory_space<vmem>>, vector<128x32xf32>
    %c0_1 = arith.constant 0 : index
    %c0_2 = arith.constant 0 : index
    %1 = vector.load %arg2[%c0_1, %c0_2] : memref<32x256xf32, #tpu.memory_space<vmem>>, vector<32x256xf32>
    %cst = arith.constant dense<0.000000e+00> : vector<128x256xf32>
    %2 = tpu.matmul %0, %1, %cst {dimension_numbers = #tpu.dot_dimension_numbers<[1], [0], [0], [1], [0, 0, 1, 1], [], []>} : vector<128x32xf32>, vector<32x256xf32>, vector<128x256xf32> -> vector<128x256xf32>
    %c0_3 = arith.constant 0 : index
    %c0_4 = arith.constant 0 : index
    %3 = vector.load %arg3[%c0_3, %c0_4] : memref<1x256xf32, #tpu.memory_space<vmem>>, vector<1x256xf32>
    %4 = vector.broadcast %3 : vector<1x256xf32> to vector<128x256xf32>
    %5 = arith.addf %2, %4 : vector<128x256xf32>
    %cst_5 = arith.constant 0.000000e+00 : f32
    %6 = vector.broadcast %cst_5 : f32 to vector<128x256xf32>
    %7 = arith.maximumf %5, %6 : vector<128x256xf32>
    %8 = arith.truncf %7 : vector<128x256xf32> to vector<128x256xbf16>
    %c0_6 = arith.constant 0 : index
    %c0_7 = arith.constant 0 : index
    %9 = vector.load %arg4[%c0_6, %c0_7] : memref<256x256xbf16, #tpu.memory_space<vmem>>, vector<256x256xbf16>
    %cst_8 = arith.constant dense<0.000000e+00> : vector<128x256xf32>
    %10 = tpu.matmul %8, %9, %cst_8 {dimension_numbers = #tpu.dot_dimension_numbers<[1], [0], [0], [1], [0, 0, 1, 1], [], []>} : vector<128x256xbf16>, vector<256x256xbf16>, vector<128x256xf32> -> vector<128x256xf32>
    %c0_9 = arith.constant 0 : index
    %c0_10 = arith.constant 0 : index
    %11 = vector.load %arg5[%c0_9, %c0_10] : memref<1x256xf32, #tpu.memory_space<vmem>>, vector<1x256xf32>
    %12 = vector.broadcast %11 : vector<1x256xf32> to vector<128x256xf32>
    %13 = arith.addf %10, %12 : vector<128x256xf32>
    %cst_11 = arith.constant 0.000000e+00 : f32
    %14 = vector.broadcast %cst_11 : f32 to vector<128x256xf32>
    %15 = arith.maximumf %13, %14 : vector<128x256xf32>
    %16 = arith.truncf %15 : vector<128x256xf32> to vector<128x256xbf16>
    %c0_12 = arith.constant 0 : index
    %c0_13 = arith.constant 0 : index
    %17 = vector.load %arg6[%c0_12, %c0_13] : memref<256x128xbf16, #tpu.memory_space<vmem>>, vector<256x128xbf16>
    %cst_14 = arith.constant dense<0.000000e+00> : vector<128x128xf32>
    %18 = tpu.matmul %16, %17, %cst_14 {dimension_numbers = #tpu.dot_dimension_numbers<[1], [0], [0], [1], [0, 0, 1, 1], [], []>} : vector<128x256xbf16>, vector<256x128xbf16>, vector<128x128xf32> -> vector<128x128xf32>
    %c0_15 = arith.constant 0 : index
    %c0_16 = arith.constant 0 : index
    %19 = vector.load %arg7[%c0_15, %c0_16] : memref<1x128xf32, #tpu.memory_space<vmem>>, vector<1x128xf32>
    %20 = vector.broadcast %19 : vector<1x128xf32> to vector<128x128xf32>
    %21 = arith.addf %18, %20 : vector<128x128xf32>
    %cst_17 = arith.constant 0.000000e+00 : f32
    %22 = vector.broadcast %cst_17 : f32 to vector<128x128xf32>
    %23 = arith.maximumf %21, %22 : vector<128x128xf32>
    %24 = arith.truncf %23 : vector<128x128xf32> to vector<128x128xbf16>
    %c0_18 = arith.constant 0 : index
    %c0_19 = arith.constant 0 : index
    %25 = vector.load %arg8[%c0_18, %c0_19] : memref<128x128xbf16, #tpu.memory_space<vmem>>, vector<128x128xbf16>
    %cst_20 = arith.constant dense<0.000000e+00> : vector<128x128xf32>
    %26 = tpu.matmul %24, %25, %cst_20 {dimension_numbers = #tpu.dot_dimension_numbers<[1], [0], [0], [1], [0, 0, 1, 1], [], []>} : vector<128x128xbf16>, vector<128x128xbf16>, vector<128x128xf32> -> vector<128x128xf32>
    %c0_21 = arith.constant 0 : index
    %c0_22 = arith.constant 0 : index
    %27 = vector.load %arg9[%c0_21, %c0_22] : memref<1x128xf32, #tpu.memory_space<vmem>>, vector<1x128xf32>
    %28 = vector.broadcast %27 : vector<1x128xf32> to vector<128x128xf32>
    %29 = arith.addf %26, %28 : vector<128x128xf32>
    %30 = arith.truncf %29 : vector<128x128xf32> to vector<128x128xbf16>
    %c0_23 = arith.constant 0 : index
    %c0_24 = arith.constant 0 : index
    %31 = vector.load %arg10[%c0_23, %c0_24] : memref<128x128xbf16, #tpu.memory_space<vmem>>, vector<128x128xbf16>
    tpu.vector_store %arg10[%c0_23, %c0_24], %30 {strides = array<i32>} : memref<128x128xbf16, #tpu.memory_space<vmem>>, vector<128x128xbf16>,
    return
  }
  func.func @transform_0(%arg0: i32) -> (i32, i32) {
    %c0_i32 = arith.constant 0 : i32
    %c0_i32_0 = arith.constant 0 : i32
    return %arg0, %c0_i32 : i32, i32
  }
  func.func @transform_1(%arg0: i32) -> (i32, i32) {
    %c0_i32 = arith.constant 0 : i32
    %c0_i32_0 = arith.constant 0 : i32
    %c0_i32_1 = arith.constant 0 : i32
    return %c0_i32, %c0_i32_0 : i32, i32
  }
  func.func @transform_2(%arg0: i32) -> (i32, i32) {
    %c0_i32 = arith.constant 0 : i32
    %c0_i32_0 = arith.constant 0 : i32
    %c0_i32_1 = arith.constant 0 : i32
    return %c0_i32, %c0_i32_0 : i32, i32
  }
  func.func @transform_3(%arg0: i32) -> (i32, i32) {
    %c0_i32 = arith.constant 0 : i32
    %c0_i32_0 = arith.constant 0 : i32
    %c0_i32_1 = arith.constant 0 : i32
    return %c0_i32, %c0_i32_0 : i32, i32
  }
  func.func @transform_4(%arg0: i32) -> (i32, i32) {
    %c0_i32 = arith.constant 0 : i32
    %c0_i32_0 = arith.constant 0 : i32
    %c0_i32_1 = arith.constant 0 : i32
    return %c0_i32, %c0_i32_0 : i32, i32
  }
  func.func @transform_5(%arg0: i32) -> (i32, i32) {
    %c0_i32 = arith.constant 0 : i32
    %c0_i32_0 = arith.constant 0 : i32
    %c0_i32_1 = arith.constant 0 : i32
    return %c0_i32, %c0_i32_0 : i32, i32
  }
  func.func @transform_6(%arg0: i32) -> (i32, i32) {
    %c0_i32 = arith.constant 0 : i32
    %c0_i32_0 = arith.constant 0 : i32
    %c0_i32_1 = arith.constant 0 : i32
    return %c0_i32, %c0_i32_0 : i32, i32
  }
  func.func @transform_7(%arg0: i32) -> (i32, i32) {
    %c0_i32 = arith.constant 0 : i32
    %c0_i32_0 = arith.constant 0 : i32
    %c0_i32_1 = arith.constant 0 : i32
    return %c0_i32, %c0_i32_0 : i32, i32
  }
  func.func @transform_8(%arg0: i32) -> (i32, i32) {
    %c0_i32 = arith.constant 0 : i32
    %c0_i32_0 = arith.constant 0 : i32
    %c0_i32_1 = arith.constant 0 : i32
    return %c0_i32, %c0_i32_0 : i32, i32
  }
  func.func @transform_9(%arg0: i32) -> (i32, i32) {
    %c0_i32 = arith.constant 0 : i32
    %c0_i32_0 = arith.constant 0 : i32
    return %arg0, %c0_i32 : i32, i32
  }
}

</mosaic_0001>

<llo_original>
// kernel: dqn_forward.1
$region0: #{dqn_forward.1}
  #allocation0 [shape = 'u32[]', space=smem, size = 0x4, offset = 0x4, fixed_abs, tag = 'smem constant byte address 0x4 - core index']
  #allocation1 [shape = 'u32[144,128]{1,0:T(1,128)}', space=vmem, size = 0x12000, scoped, tag = 'internal scratch']
  %s0 = inlined_call_operand.vmem [shape: f32[256,32], index: 0, kind: input, shape index: {}]
  %s1 = inlined_call_operand.vmem [shape: f32[32,256], index: 1, kind: input, shape index: {}]
  %s2 = inlined_call_operand.vmem [shape: f32[1,256], index: 2, kind: input, shape index: {}]
  %s3 = inlined_call_operand.vmem [shape: bf16[256,256], index: 3, kind: input, shape index: {}]
  %s4 = inlined_call_operand.vmem [shape: f32[1,256], index: 4, kind: input, shape index: {}]
  %s5 = inlined_call_operand.hbm [shape: bf16[256,128], index: 5, kind: input, shape index: {}]
  %s6 = inlined_call_operand.vmem [shape: f32[1,128], index: 6, kind: input, shape index: {}]
  %s7 = inlined_call_operand.hbm [shape: bf16[128,128], index: 7, kind: input, shape index: {}]
  %s8 = inlined_call_operand.vmem [shape: f32[1,128], index: 8, kind: input, shape index: {}]
  %s9 = inlined_call_operand.vmem [shape: bf16[256,128], index: 9, kind: output, shape index: {}]
  %s10 = sld [smem:[#allocation0]]
  $region77: #{dqn_forward.1} parent=0
    _
  %s12 = ssub.s32 1, %s10
  %s13 = scalar_select 0, %s12, %s10
  $region1: #{dqn_forward.1} parent=0
    #allocation2 [shape = 'u8[65536]{0}', space=vmem, size = 0x10000, scoped, tag = 'input window, operand 5, single buffered']
    #allocation3 [shape = 's32[2]{0}', space=sflag, size = 0x8, scoped, tag = 'scoped memory for dqn_forward.1']
    #allocation4 [shape = 'u8[32768]{0}', space=vmem, size = 0x8000, scoped, tag = 'input window, operand 7, single buffered']
    #allocation5 [shape = 's32[1]{0}', space=sflag, size = 0x4, scoped, tag = 'scoped memory for dqn_forward.1']
    %14 = vsyncpa [#allocation3], 0
    %15 = vsyncpa [#allocation5], 0
    loop: start=0, step=1, limit=4
    $region2: #{dqn_forward.1} parent=1 // loop_pre_header
      _
    $region3: #{dqn_forward.1} parent=1 // loop_header
      %s17 = sphi 0, %s21
      %p18 = scmp.ge.s32.totalorder %s17, 4
      %s27 = sphi 0, %s29
      %s30 = sphi 0, %s27
      %s31 = sphi 0, %s30
      %s47 = sphi 0, %s31
      %s51 = sphi 0, %s51
      %s53 = sphi 0, %s51
      %s54 = sphi 0, %s53
      %s68 = sphi 0, %s54
      %s72 = sphi 0, %s72
      %s74 = sphi 0, %s72
      %s75 = sphi 0, %s74
      %s89 = sphi 0, %s75
      %s93 = sphi 0, %s93
      %s95 = sphi 0, %s93
      %s96 = sphi 0, %s95
      %s110 = sphi 0, %s96
      %s114 = sphi 0, %s114
      %s116 = sphi 0, %s114
      %s117 = sphi 0, %s116
      %s131 = sphi 0, %s117
      %s135 = sphi 0, %s135
      %s137 = sphi 0, %s135
      %s138 = sphi 0, %s137
      %s152 = sphi 0, %s138
      %s156 = sphi 0, %s156
      %s158 = sphi 0, %s156
      %s159 = sphi 0, %s158
      %s173 = sphi 0, %s159
      %s177 = sphi 0, %s177
      %s179 = sphi 0, %s177
      %s180 = sphi 0, %s179
      %s194 = sphi 0, %s180
      %s198 = sphi 0, %s198
      %s200 = sphi 0, %s198
      %s201 = sphi 0, %s200
      %s215 = sphi 0, %s201
      %s221 = sphi 0, %s223
      %s224 = sphi 0, %s221
      %s225 = sphi 0, %s224
      %s241 = sphi 0, %s225
    $region4: #{dqn_forward.1} parent=1 // loop_header_branch
      %20 = sbr.rel (%p18) target = $region8
    $region5: #{dqn_forward.1} parent=1 // loop_body
      %s22 = ssub.s32 %s17, 1
      %s23 = ssub.s32 %s17, 2
      %s24 = sadd.s32 %s17, 1
      %s25 = ssub.s32 %s17, %s24
      %p26 = scmp.eq.s32.totalorder %s25, 0
      %s28 = sadd.s32 %s27, 1
      %s29 = scalar_select %p26, %s27, %s28
      %p32 = pneg %p26
      %p33 = scmp.eq.s32.totalorder %s17, 1
      %p34 = por %p32, %p33
      %p35 = scmp.ne.s32.totalorder %s27, %s30
      %p36 = scmp.eq.s32.totalorder %s17, 0
      %p37 = por %p35, %p36
      %p38 = scmp.ne.s32.totalorder %s27, %s30
      %p39 = scmp.eq.s32.totalorder %s22, 1
      %p40 = por %p38, %p39
      %p41 = scmp.ne.s32.totalorder %s30, %s31
      %p42 = scmp.eq.s32.totalorder %s22, 0
      %p43 = por %p41, %p42
      %p44 = scmp.ne.s32.totalorder %s30, %s31
      %p45 = scmp.eq.s32.totalorder %s23, 1
      %p46 = por %p44, %p45
      %p48 = scmp.ne.s32.totalorder %s31, %s47
      %p49 = scmp.eq.s32.totalorder %s23, 0
      %p50 = por %p48, %p49
      %s52 = sadd.s32 %s51, 1
      %p55 = scmp.eq.s32.totalorder %s17, 1
      %p56 = scmp.ne.s32.totalorder %s51, %s53
      %p57 = scmp.eq.s32.totalorder %s17, 0
      %p58 = por %p56, %p57
      %p59 = scmp.ne.s32.totalorder %s51, %s53
      %p60 = scmp.eq.s32.totalorder %s22, 1
      %p61 = por %p59, %p60
      %p62 = scmp.ne.s32.totalorder %s53, %s54
      %p63 = scmp.eq.s32.totalorder %s22, 0
      %p64 = por %p62, %p63
      %p65 = scmp.ne.s32.totalorder %s53, %s54
      %p66 = scmp.eq.s32.totalorder %s23, 1
      %p67 = por %p65, %p66
      %p69 = scmp.ne.s32.totalorder %s54, %s68
      %p70 = scmp.eq.s32.totalorder %s23, 0
      %p71 = por %p69, %p70
      %s73 = sadd.s32 %s72, 1
      %p76 = scmp.eq.s32.totalorder %s17, 1
      %p77 = scmp.ne.s32.totalorder %s72, %s74
      %p78 = scmp.eq.s32.totalorder %s17, 0
      %p79 = por %p77, %p78
      %p80 = scmp.ne.s32.totalorder %s72, %s74
      %p81 = scmp.eq.s32.totalorder %s22, 1
      %p82 = por %p80, %p81
      %p83 = scmp.ne.s32.totalorder %s74, %s75
      %p84 = scmp.eq.s32.totalorder %s22, 0
      %p85 = por %p83, %p84
      %p86 = scmp.ne.s32.totalorder %s74, %s75
      %p87 = scmp.eq.s32.totalorder %s23, 1
      %p88 = por %p86, %p87
      %p90 = scmp.ne.s32.totalorder %s75, %s89
      %p91 = scmp.eq.s32.totalorder %s23, 0
      %p92 = por %p90, %p91
      %s94 = sadd.s32 %s93, 1
      %p97 = scmp.eq.s32.totalorder %s17, 1
      %p98 = scmp.ne.s32.totalorder %s93, %s95
      %p99 = scmp.eq.s32.totalorder %s17, 0
      %p100 = por %p98, %p99
      %p101 = scmp.ne.s32.totalorder %s93, %s95
      %p102 = scmp.eq.s32.totalorder %s22, 1
      %p103 = por %p101, %p102
      %p104 = scmp.ne.s32.totalorder %s95, %s96
      %p105 = scmp.eq.s32.totalorder %s22, 0
      %p106 = por %p104, %p105
      %p107 = scmp.ne.s32.totalorder %s95, %s96
      %p108 = scmp.eq.s32.totalorder %s23, 1
      %p109 = por %p107, %p108
      %p111 = scmp.ne.s32.totalorder %s96, %s110
      %p112 = scmp.eq.s32.totalorder %s23, 0
      %p113 = por %p111, %p112
      %s115 = sadd.s32 %s114, 1
      %p118 = scmp.eq.s32.totalorder %s17, 1
      %p119 = scmp.ne.s32.totalorder %s114, %s116
      %p120 = scmp.eq.s32.totalorder %s17, 0
      %p121 = por %p119, %p120
      %p122 = scmp.ne.s32.totalorder %s114, %s116
      %p123 = scmp.eq.s32.totalorder %s22, 1
      %p124 = por %p122, %p123
      %p125 = scmp.ne.s32.totalorder %s116, %s117
      %p126 = scmp.eq.s32.totalorder %s22, 0
      %p127 = por %p125, %p126
      %p128 = scmp.ne.s32.totalorder %s116, %s117
      %p129 = scmp.eq.s32.totalorder %s23, 1
      %p130 = por %p128, %p129
      %p132 = scmp.ne.s32.totalorder %s117, %s131
      %p133 = scmp.eq.s32.totalorder %s23, 0
      %p134 = por %p132, %p133
      %s136 = sadd.s32 %s135, 1
      %p139 = scmp.eq.s32.totalorder %s17, 1
      %p140 = scmp.ne.s32.totalorder %s135, %s137
      %p141 = scmp.eq.s32.totalorder %s17, 0
      %p142 = por %p140, %p141
      %p143 = scmp.ne.s32.totalorder %s135, %s137
      %p144 = scmp.eq.s32.totalorder %s22, 1
      %p145 = por %p143, %p144
      %p146 = scmp.ne.s32.totalorder %s137, %s138
      %p147 = scmp.eq.s32.totalorder %s22, 0
      %p148 = por %p146, %p147
      %p149 = scmp.ne.s32.totalorder %s137, %s138
      %p150 = scmp.eq.s32.totalorder %s23, 1
      %p151 = por %p149, %p150
      %p153 = scmp.ne.s32.totalorder %s138, %s152
      %p154 = scmp.eq.s32.totalorder %s23, 0
      %p155 = por %p153, %p154
      %s157 = sadd.s32 %s156, 1
      %p160 = scmp.eq.s32.totalorder %s17, 1
      %p161 = scmp.ne.s32.totalorder %s156, %s158
      %p162 = scmp.eq.s32.totalorder %s17, 0
      %p163 = por %p161, %p162
      %p164 = scmp.ne.s32.totalorder %s156, %s158
      %p165 = scmp.eq.s32.totalorder %s22, 1
      %p166 = por %p164, %p165
      %p167 = scmp.ne.s32.totalorder %s158, %s159
      %p168 = scmp.eq.s32.totalorder %s22, 0
      %p169 = por %p167, %p168
      %p170 = scmp.ne.s32.totalorder %s158, %s159
      %p171 = scmp.eq.s32.totalorder %s23, 1
      %p172 = por %p170, %p171
      %p174 = scmp.ne.s32.totalorder %s159, %s173
      %p175 = scmp.eq.s32.totalorder %s23, 0
      %p176 = por %p174, %p175
      %s178 = sadd.s32 %s177, 1
      %p181 = scmp.eq.s32.totalorder %s17, 1
      %p182 = scmp.ne.s32.totalorder %s177, %s179
      %p183 = scmp.eq.s32.totalorder %s17, 0
      %p184 = por %p182, %p183
      %p185 = scmp.ne.s32.totalorder %s177, %s179
      %p186 = scmp.eq.s32.totalorder %s22, 1
      %p187 = por %p185, %p186
      %p188 = scmp.ne.s32.totalorder %s179, %s180
      %p189 = scmp.eq.s32.totalorder %s22, 0
      %p190 = por %p188, %p189
      %p191 = scmp.ne.s32.totalorder %s179, %s180
      %p192 = scmp.eq.s32.totalorder %s23, 1
      %p193 = por %p191, %p192
      %p195 = scmp.ne.s32.totalorder %s180, %s194
      %p196 = scmp.eq.s32.totalorder %s23, 0
      %p197 = por %p195, %p196
      %s199 = sadd.s32 %s198, 1
      %p202 = scmp.eq.s32.totalorder %s17, 1
      %p203 = scmp.ne.s32.totalorder %s198, %s200
      %p204 = scmp.eq.s32.totalorder %s17, 0
      %p205 = por %p203, %p204
      %p206 = scmp.ne.s32.totalorder %s198, %s200
      %p207 = scmp.eq.s32.totalorder %s22, 1
      %p208 = por %p206, %p207
      %p209 = scmp.ne.s32.totalorder %s200, %s201
      %p210 = scmp.eq.s32.totalorder %s22, 0
      %p211 = por %p209, %p210
      %p212 = scmp.ne.s32.totalorder %s200, %s201
      %p213 = scmp.eq.s32.totalorder %s23, 1
      %p214 = por %p212, %p213
      %p216 = scmp.ne.s32.totalorder %s201, %s215
      %p217 = scmp.eq.s32.totalorder %s23, 0
      %p218 = por %p216, %p217
      %s219 = ssub.s32 %s17, %s24
      %p220 = scmp.eq.s32.totalorder %s219, 0
      %s222 = sadd.s32 %s221, 1
      %s223 = scalar_select %p220, %s221, %s222
      %p226 = pneg %p220
      %p227 = scmp.eq.s32.totalorder %s17, 1
      %p228 = por %p226, %p227
      %p229 = scmp.ne.s32.totalorder %s221, %s224
      %p230 = scmp.eq.s32.totalorder %s17, 0
      %p231 = por %p229, %p230
      %p232 = scmp.ne.s32.totalorder %s221, %s224
      %p233 = scmp.eq.s32.totalorder %s22, 1
      %p234 = por %p232, %p233
      %p235 = scmp.ne.s32.totalorder %s224, %s225
      %p236 = scmp.eq.s32.totalorder %s22, 0
      %p237 = por %p235, %p236
      %p238 = scmp.ne.s32.totalorder %s224, %s225
      %p239 = scmp.eq.s32.totalorder %s23, 1
      %p240 = por %p238, %p239
      %p242 = scmp.ne.s32.totalorder %s225, %s241
      %p243 = scmp.eq.s32.totalorder %s23, 0
      %p244 = por %p242, %p243
      %p245 = scmp.le.s32.totalorder 1, %s17
      %p246 = scmp.lt.s32.totalorder %s17, 3
      %p247 = pnand %p245, %p246
      %p248 = pneg %p247
      // Predicated region
      $region9: #{dqn_forward.1} parent=5 // pred_check
        _
      $region10: #{dqn_forward.1} parent=5 // pred_check_branch
        %250 = sbr.rel (%p247) target = $region12
      $region11: #{dqn_forward.1} parent=5 // pred_region
        %s251 = ssub.s32 %s17, 1
        // Predicated region
        $region13: #{dqn_forward.1} parent=11 // pred_check
          %p252 = pneg %p64
        $region14: #{dqn_forward.1} parent=11 // pred_check_branch
          %254 = sbr.rel (%p252) target = $region16
        $region15: #{dqn_forward.1} parent=11 // pred_region
          _
        $region16: #{dqn_forward.1} parent=11 // pred_fallthru
          _
        // Predicated region
        $region17: #{dqn_forward.1} parent=11 // pred_check
          %p255 = pneg %p85
        $region18: #{dqn_forward.1} parent=11 // pred_check_branch
          %257 = sbr.rel (%p255) target = $region20
        $region19: #{dqn_forward.1} parent=11 // pred_region
          _
        $region20: #{dqn_forward.1} parent=11 // pred_fallthru
          _
        // Predicated region
        $region21: #{dqn_forward.1} parent=11 // pred_check
          %p258 = pneg %p106
        $region22: #{dqn_forward.1} parent=11 // pred_check_branch
          %260 = sbr.rel (%p258) target = $region24
        $region23: #{dqn_forward.1} parent=11 // pred_region
          _
        $region24: #{dqn_forward.1} parent=11 // pred_fallthru
          _
        // Predicated region
        $region25: #{dqn_forward.1} parent=11 // pred_check
          %p261 = pneg %p127
        $region26: #{dqn_forward.1} parent=11 // pred_check_branch
          %263 = sbr.rel (%p261) target = $region28
        $region27: #{dqn_forward.1} parent=11 // pred_region
          _
        $region28: #{dqn_forward.1} parent=11 // pred_fallthru
          _
        // Predicated region
        $region29: #{dqn_forward.1} parent=11 // pred_check
          %p264 = pneg %p148
        $region30: #{dqn_forward.1} parent=11 // pred_check_branch
          %266 = sbr.rel (%p264) target = $region32
        $region31: #{dqn_forward.1} parent=11 // pred_region
          %s268 = ssub.s32 2048, 2048
          %269 = vsyncadd [#allocation3], %s268
          %s270 = sshll.u32 [#allocation2], 4
          %s271 = int_to_ptr.vmem [resolvable:$true] %s270
          %276 = dma.hbm_to_vmem [thread:$0]  %s5, 2048, %s271, [#allocation3], 64, 64, 4
        $region32: #{dqn_forward.1} parent=11 // pred_fallthru
          _
        // Predicated region
        $region33: #{dqn_forward.1} parent=11 // pred_check
          %p277 = pneg %p169
        $region34: #{dqn_forward.1} parent=11 // pred_check_branch
          %279 = sbr.rel (%p277) target = $region36
        $region35: #{dqn_forward.1} parent=11 // pred_region
          _
        $region36: #{dqn_forward.1} parent=11 // pred_fallthru
          _
        // Predicated region
        $region37: #{dqn_forward.1} parent=11 // pred_check
          %p280 = pneg %p190
        $region38: #{dqn_forward.1} parent=11 // pred_check_branch
          %282 = sbr.rel (%p280) target = $region40
        $region39: #{dqn_forward.1} parent=11 // pred_region
          %s284 = ssub.s32 1024, 1024
          %285 = vsyncadd [#allocation5], %s284
          %s286 = sshll.u32 [#allocation4], 4
          %s287 = int_to_ptr.vmem [resolvable:$true] %s286
          %292 = dma.hbm_to_vmem [thread:$0]  %s7, 1024, %s287, [#allocation5], 64, 64, 4
        $region40: #{dqn_forward.1} parent=11 // pred_fallthru
          _
        // Predicated region
        $region41: #{dqn_forward.1} parent=11 // pred_check
          %p293 = pneg %p211
        $region42: #{dqn_forward.1} parent=11 // pred_check_branch
          %295 = sbr.rel (%p293) target = $region44
        $region43: #{dqn_forward.1} parent=11 // pred_region
          _
        $region44: #{dqn_forward.1} parent=11 // pred_fallthru
          _
      $region12: #{dqn_forward.1} parent=5 // pred_fallthru
        _
      %p296 = scmp.lt.s32.totalorder %s17, 2
      // Predicated region
      $region45: #{dqn_forward.1} parent=5 // pred_check
        %p297 = pneg %p296
      $region46: #{dqn_forward.1} parent=5 // pred_check_branch
        %299 = sbr.rel (%p297) target = $region48
      $region47: #{dqn_forward.1} parent=5 // pred_region
        // Predicated region
        $region49: #{dqn_forward.1} parent=47 // pred_check
          %p300 = pneg %p37
        $region50: #{dqn_forward.1} parent=47 // pred_check_branch
          %302 = sbr.rel (%p300) target = $region52
        $region51: #{dqn_forward.1} parent=47 // pred_region
          %s303 = smul.u32 16, %s17
          %p304 = scmp.lt.s32.totalorder %s303, 31
          %s305 = scalar_select %p304, %s303, 31
          %s306 = smul.addr %s305, 8
          %s307 = scalar_lea.vmem %s0, %s306
          %s308 = smul.u32 16, %s17
        $region52: #{dqn_forward.1} parent=47 // pred_fallthru
          _
      $region48: #{dqn_forward.1} parent=5 // pred_fallthru
        _
      %p309 = scmp.le.s32.totalorder 1, %s17
      %p310 = scmp.lt.s32.totalorder %s17, 3
      %p311 = pnand %p309, %p310
      %p312 = pneg %p311
      // Predicated region
      $region53: #{dqn_forward.1} parent=5 // pred_check
        _
      $region54: #{dqn_forward.1} parent=5 // pred_check_branch
        %314 = sbr.rel (%p311) target = $region56
      $region55: #{dqn_forward.1} parent=5 // pred_region
        %s315 = ssub.s32 %s17, 1
        // Predicated region
        $region57: #{dqn_forward.1} parent=55 // pred_check
          %p316 = pneg %p148
        $region58: #{dqn_forward.1} parent=55 // pred_check_branch
          %318 = sbr.rel (%p316) target = $region60
        $region59: #{dqn_forward.1} parent=55 // pred_region
          %319 = dma.done [#allocation3], 2048
        $region60: #{dqn_forward.1} parent=55 // pred_fallthru
          _
        // Predicated region
        $region61: #{dqn_forward.1} parent=55 // pred_check
          %p320 = pneg %p190
        $region62: #{dqn_forward.1} parent=55 // pred_check_branch
          %322 = sbr.rel (%p320) target = $region64
        $region63: #{dqn_forward.1} parent=55 // pred_region
          %323 = dma.done [#allocation5], 1024
        $region64: #{dqn_forward.1} parent=55 // pred_fallthru
          _
        %s324 = smul.u32 16, %s22
        %p325 = scmp.lt.s32.totalorder %s324, 31
        %s326 = scalar_select %p325, %s324, 31
        %s327 = smul.addr %s326, 8
        %s328 = scalar_lea.vmem %s0, %s327
        %p329 = pneg %p43
        %p330 = pneg %p40
        %p331 = pneg %p64
        %p332 = pneg %p61
        %p333 = pneg %p85
        %p334 = pneg %p82
        %p335 = pneg %p106
        %p336 = pneg %p103
        %p337 = pneg %p127
        %p338 = pneg %p124
        %p339 = pneg %p148
        %p340 = pneg %p145
        %p341 = pneg %p169
        %p342 = pneg %p166
        %p343 = pneg %p190
        %p344 = pneg %p187
        %p345 = pneg %p211
        %p346 = pneg %p208
        %p347 = pneg %p237
        %p348 = pneg %p234
        %s349 = smul.u32 16, %s22
        %p350 = scmp.lt.s32.totalorder %s349, 31
        %s351 = scalar_select %p350, %s349, 31
        %s352 = smul.addr %s351, 4
        %s353 = scalar_lea.vmem %s9, %s352
        %s354 = smul.u32 16, %s22
        %p355 = scmp.lt.s32.totalorder %s354, 31
        %s356 = scalar_select %p355, %s354, 31
        %s357 = smul.addr %s356, 8
        %s358 = scalar_lea.vmem %s0, %s357
        %s359 = smul.u32 16, %s22
        %s360 = smul.u32 16, %s22
        %p361 = scmp.lt.s32.totalorder %s360, 31
        %s362 = scalar_select %p361, %s360, 31
        %s363 = smul.addr %s362, 4
        %s364 = scalar_lea.vmem %s9, %s363
        %s365 = smul.u32 16, %s22
        %v367 = vld [vmem:[%s358] sm:$0xff]
        %v368 = vld [vmem:[%s358 + $0x8] sm:$0xff]
        %v369 = vld [vmem:[%s358 + $0x10] sm:$0xff]
        %v370 = vld [vmem:[%s358 + $0x18] sm:$0xff]
        %v371 = vld [vmem:[%s358 + $0x20] sm:$0xff]
        %v372 = vld [vmem:[%s358 + $0x28] sm:$0xff]
        %v373 = vld [vmem:[%s358 + $0x30] sm:$0xff]
        %v374 = vld [vmem:[%s358 + $0x38] sm:$0xff]
        %v375 = vld [vmem:[%s358 + $0x40] sm:$0xff]
        %v376 = vld [vmem:[%s358 + $0x48] sm:$0xff]
        %v377 = vld [vmem:[%s358 + $0x50] sm:$0xff]
        %v378 = vld [vmem:[%s358 + $0x58] sm:$0xff]
        %v379 = vld [vmem:[%s358 + $0x60] sm:$0xff]
        %v380 = vld [vmem:[%s358 + $0x68] sm:$0xff]
        %v381 = vld [vmem:[%s358 + $0x70] sm:$0xff]
        %v382 = vld [vmem:[%s358 + $0x78] sm:$0xff]
        %v383 = vld [vmem:[%s1] sm:$0xff]
        %v384 = vld [vmem:[%s1 + $0x8] sm:$0xff]
        %v385 = vld [vmem:[%s1 + $0x10] sm:$0xff]
        %v386 = vld [vmem:[%s1 + $0x18] sm:$0xff]
        %v387 = vld [vmem:[%s1 + $0x20] sm:$0xff]
        %v388 = vld [vmem:[%s1 + $0x28] sm:$0xff]
        %v389 = vld [vmem:[%s1 + $0x30] sm:$0xff]
        %v390 = vld [vmem:[%s1 + $0x38] sm:$0xff]
        %v391 = vld [vmem:[%s2] sm:$0x3]
        %v393 = vlaneseq
        %v394 = vshrl.u32 %v393, 7
        %v395 = vsub.s32 0, %v394
        %v396 = vrot.slane %v391, %v395
        %v397 = vlaneseq
        %v398 = vshrl.u32 %v397, 7
        %v399 = vsub.s32 1, %v398
        %v400 = vrot.slane %v391, %v399
        %vm403 = vcmask 261120
        %v405 = vsel %vm403, %v367, 0
        %v408 = vsel %vm403, %v368, 0
        %v411 = vsel %vm403, %v369, 0
        %v414 = vsel %vm403, %v370, 0
        %v417 = vsel %vm403, %v371, 0
        %v420 = vsel %vm403, %v372, 0
        %v423 = vsel %vm403, %v373, 0
        %v426 = vsel %vm403, %v374, 0
        %v429 = vsel %vm403, %v375, 0
        %v432 = vsel %vm403, %v376, 0
        %v435 = vsel %vm403, %v377, 0
        %v438 = vsel %vm403, %v378, 0
        %v441 = vsel %vm403, %v379, 0
        %v444 = vsel %vm403, %v380, 0
        %v447 = vsel %vm403, %v381, 0
        %v450 = vsel %vm403, %v382, 0
        %452 = vmatprep.subr.mxu0 %v384
        %453 = vmatpush1.msra.mxu0 %v383
        %454 = vmatprep.subr.mxu0 %v386
        %455 = vmatpush1.msra.mxu0 %v385
        %456 = vmatprep.subr.mxu0 %v388
        %457 = vmatpush1.msra.mxu0 %v387
        %458 = vmatprep.subr.mxu0 %v390
        %459 = vmatpush1.msra.mxu0 %v389
        %460 = vmatprep.subr.mxu0 0.0
        %461 = vmatpush1.msra.mxu0 0.0
        %462 = vmatprep.subr.mxu0 0.0
        %463 = vmatpush1.msra.mxu0 0.0
        %464 = vmatprep.subr.mxu0 0.0
        %465 = vmatpush1.msra.mxu0 0.0
        %466 = vmatprep.subr.mxu0 0.0
        %467 = vmatpush1.msra.mxu0 0.0
        %468 = vmatprep.subr.mxu0 0.0
        %469 = vmatpush1.msra.mxu0 0.0
        %470 = vmatprep.subr.mxu0 0.0
        %471 = vmatpush1.msra.mxu0 0.0
        %472 = vmatprep.subr.mxu0 0.0
        %473 = vmatpush1.msra.mxu0 0.0
        %474 = vmatprep.subr.mxu0 0.0
        %475 = vmatpush1.msra.mxu0 0.0
        %476 = vmatprep.subr.mxu0 0.0
        %477 = vmatpush1.msra.mxu0 0.0
        %478 = vmatprep.subr.mxu0 0.0
        %479 = vmatpush1.msra.mxu0 0.0
        %480 = vmatprep.subr.mxu0 0.0
        %481 = vmatpush1.msra.mxu0 0.0
        %482 = vmatprep.subr.mxu0 0.0
        %483 = vmatpush1.msra.mxu0 0.0
        %484 = vmatprep.subr.mxu0 0.0
        %485 = vmatpush1.msra.mxu0 0.0
        %486 = vmatprep.subr.mxu0 0.0
        %487 = vmatpush1.msra.mxu0 0.0
        %488 = vmatprep.subr.mxu0 0.0
        %489 = vmatpush1.msra.mxu0 0.0
        %490 = vmatprep.subr.mxu0 0.0
        %491 = vmatpush1.msra.mxu0 0.0
        %492 = vmatprep.subr.mxu0 0.0
        %493 = vmatpush1.msra.mxu0 0.0
        %494 = vmatprep.subr.mxu0 0.0
        %495 = vmatpush1.msra.mxu0 0.0
        %496 = vmatprep.subr.mxu0 0.0
        %497 = vmatpush1.msra.mxu0 0.0
        %498 = vmatprep.subr.mxu0 0.0
        %499 = vmatpush1.msra.mxu0 0.0
        %500 = vmatprep.subr.mxu0 0.0
        %501 = vmatpush1.msra.mxu0 0.0
        %502 = vmatprep.subr.mxu0 0.0
        %503 = vmatpush1.msra.mxu0 0.0
        %504 = vmatprep.subr.mxu0 0.0
        %505 = vmatpush1.msra.mxu0 0.0
        %506 = vmatprep.subr.mxu0 0.0
        %507 = vmatpush1.msra.mxu0 0.0
        %508 = vmatprep.subr.mxu0 0.0
        %509 = vmatpush1.msra.mxu0 0.0
        %510 = vmatprep.subr.mxu0 0.0
        %511 = vmatpush1.msra.mxu0 0.0
        %512 = vmatprep.subr.mxu0 0.0
        %513 = vmatpush1.msra.mxu0 0.0
        %514 = vmatprep.subr.mxu0 0.0
        %515 = vmatpush1.msra.mxu0 0.0
        %516 = vmatprep.mubr.f32.mxu0 0.0
        %517 = vmatmul.mubr.f32.gmra.mrb[0].mxu0 %v405
        %v518 = vpop.f32.mrb[0].mxu0
        %v519 = vadd.f32 %v396, %v518
        %v520 = vpop.f32.mrb[0].mxu0
        %v521 = vadd.f32 %v400, %v520
        %522 = vmatprep.mubr.f32.mxu0 0.0
        %523 = vmatmul.mubr.f32.gmra.mrb[0].mxu0 %v408
        %v524 = vpop.f32.mrb[0].mxu0
        %v525 = vadd.f32 %v396, %v524
        %v526 = vpop.f32.mrb[0].mxu0
        %v527 = vadd.f32 %v400, %v526
        %528 = vmatprep.mubr.f32.mxu0 0.0
        %529 = vmatmul.mubr.f32.gmra.mrb[0].mxu0 %v411
        %v530 = vpop.f32.mrb[0].mxu0
        %v531 = vadd.f32 %v396, %v530
        %v532 = vpop.f32.mrb[0].mxu0
        %v533 = vadd.f32 %v400, %v532
        %534 = vmatprep.mubr.f32.mxu0 0.0
        %535 = vmatmul.mubr.f32.gmra.mrb[0].mxu0 %v414
        %v536 = vpop.f32.mrb[0].mxu0
        %v537 = vadd.f32 %v396, %v536
        %v538 = vpop.f32.mrb[0].mxu0
        %v539 = vadd.f32 %v400, %v538
        %540 = vmatprep.mubr.f32.mxu0 0.0
        %541 = vmatmul.mubr.f32.gmra.mrb[0].mxu0 %v417
        %v542 = vpop.f32.mrb[0].mxu0
        %v543 = vadd.f32 %v396, %v542
        %v544 = vpop.f32.mrb[0].mxu0
        %v545 = vadd.f32 %v400, %v544
        %546 = vmatprep.mubr.f32.mxu0 0.0
        %547 = vmatmul.mubr.f32.gmra.mrb[0].mxu0 %v420
        %v548 = vpop.f32.mrb[0].mxu0
        %v549 = vadd.f32 %v396, %v548
        %v550 = vpop.f32.mrb[0].mxu0
        %v551 = vadd.f32 %v400, %v550
        %552 = vmatprep.mubr.f32.mxu0 0.0
        %553 = vmatmul.mubr.f32.gmra.mrb[0].mxu0 %v423
        %v554 = vpop.f32.mrb[0].mxu0
        %v555 = vadd.f32 %v396, %v554
        %v556 = vpop.f32.mrb[0].mxu0
        %v557 = vadd.f32 %v400, %v556
        %558 = vmatprep.mubr.f32.mxu0 0.0
        %559 = vmatmul.mubr.f32.gmra.mrb[0].mxu0 %v426
        %v560 = vpop.f32.mrb[0].mxu0
        %v561 = vadd.f32 %v396, %v560
        %v562 = vpop.f32.mrb[0].mxu0
        %v563 = vadd.f32 %v400, %v562
        %564 = vmatprep.mubr.f32.mxu0 0.0
        %565 = vmatmul.mubr.f32.gmra.mrb[0].mxu0 %v429
        %v566 = vpop.f32.mrb[0].mxu0
        %v567 = vadd.f32 %v396, %v566
        %v568 = vpop.f32.mrb[0].mxu0
        %v569 = vadd.f32 %v400, %v568
        %570 = vmatprep.mubr.f32.mxu0 0.0
        %571 = vmatmul.mubr.f32.gmra.mrb[0].mxu0 %v432
        %v572 = vpop.f32.mrb[0].mxu0
        %v573 = vadd.f32 %v396, %v572
        %v574 = vpop.f32.mrb[0].mxu0
        %v575 = vadd.f32 %v400, %v574
        %576 = vmatprep.mubr.f32.mxu0 0.0
        %577 = vmatmul.mubr.f32.gmra.mrb[0].mxu0 %v435
        %v578 = vpop.f32.mrb[0].mxu0
        %v579 = vadd.f32 %v396, %v578
        %v580 = vpop.f32.mrb[0].mxu0
        %v581 = vadd.f32 %v400, %v580
        %582 = vmatprep.mubr.f32.mxu0 0.0
        %583 = vmatmul.mubr.f32.gmra.mrb[0].mxu0 %v438
        %v584 = vpop.f32.mrb[0].mxu0
        %v585 = vadd.f32 %v396, %v584
        %v586 = vpop.f32.mrb[0].mxu0
        %v587 = vadd.f32 %v400, %v586
        %588 = vmatprep.mubr.f32.mxu0 0.0
        %589 = vmatmul.mubr.f32.gmra.mrb[0].mxu0 %v441
        %v590 = vpop.f32.mrb[0].mxu0
        %v591 = vadd.f32 %v396, %v590
        %v592 = vpop.f32.mrb[0].mxu0
        %v593 = vadd.f32 %v400, %v592
        %594 = vmatprep.mubr.f32.mxu0 0.0
        %595 = vmatmul.mubr.f32.gmra.mrb[0].mxu0 %v444
        %v596 = vpop.f32.mrb[0].mxu0
        %v597 = vadd.f32 %v396, %v596
        %v598 = vpop.f32.mrb[0].mxu0
        %v599 = vadd.f32 %v400, %v598
        %600 = vmatprep.mubr.f32.mxu0 0.0
        %601 = vmatmul.mubr.f32.gmra.mrb[0].mxu0 %v447
        %v602 = vpop.f32.mrb[0].mxu0
        %v603 = vadd.f32 %v396, %v602
        %v604 = vpop.f32.mrb[0].mxu0
        %v605 = vadd.f32 %v400, %v604
        %606 = vmatprep.mubr.f32.mxu0 0.0
        %607 = vmatmul.mubr.f32.gmra.mrb[0].mxu0 %v450
        %v608 = vpop.f32.mrb[0].mxu0
        %v609 = vadd.f32 %v396, %v608
        %v610 = vpop.f32.mrb[0].mxu0
        %v611 = vadd.f32 %v400, %v610
        %612 = vdwg.mxu0
        %v613 = vmax.f32 %v519, 0.0
        %v614 = vmax.f32 %v521, 0.0
        %v615 = vmax.f32 %v525, 0.0
        %v616 = vmax.f32 %v527, 0.0
        %v617 = vmax.f32 %v531, 0.0
        %v618 = vmax.f32 %v533, 0.0
        %v619 = vmax.f32 %v537, 0.0
        %v620 = vmax.f32 %v539, 0.0
        %v621 = vmax.f32 %v543, 0.0
        %v622 = vmax.f32 %v545, 0.0
        %v623 = vmax.f32 %v549, 0.0
        %v624 = vmax.f32 %v551, 0.0
        %v625 = vmax.f32 %v555, 0.0
        %v626 = vmax.f32 %v557, 0.0
        %v627 = vmax.f32 %v561, 0.0
        %v628 = vmax.f32 %v563, 0.0
        %v629 = vmax.f32 %v567, 0.0
        %v630 = vmax.f32 %v569, 0.0
        %v631 = vmax.f32 %v573, 0.0
        %v632 = vmax.f32 %v575, 0.0
        %v633 = vmax.f32 %v579, 0.0
        %v634 = vmax.f32 %v581, 0.0
        %v635 = vmax.f32 %v585, 0.0
        %v636 = vmax.f32 %v587, 0.0
        %v637 = vmax.f32 %v591, 0.0
        %v638 = vmax.f32 %v593, 0.0
        %v639 = vmax.f32 %v597, 0.0
        %v640 = vmax.f32 %v599, 0.0
        %v641 = vmax.f32 %v603, 0.0
        %v642 = vmax.f32 %v605, 0.0
        %v643 = vmax.f32 %v609, 0.0
        %v644 = vmax.f32 %v611, 0.0
        %v645 = vpack.c.bf16 %v615, %v613
        %v646 = vpack.c.bf16 %v616, %v614
        %v647 = vpack.c.bf16 %v619, %v617
        %v648 = vpack.c.bf16 %v620, %v618
        %v649 = vpack.c.bf16 %v623, %v621
        %v650 = vpack.c.bf16 %v624, %v622
        %v651 = vpack.c.bf16 %v627, %v625
        %v652 = vpack.c.bf16 %v628, %v626
        %v653 = vpack.c.bf16 %v631, %v629
        %v654 = vpack.c.bf16 %v632, %v630
        %v655 = vpack.c.bf16 %v635, %v633
        %v656 = vpack.c.bf16 %v636, %v634
        %v657 = vpack.c.bf16 %v639, %v637
        %v658 = vpack.c.bf16 %v640, %v638
        %v659 = vpack.c.bf16 %v643, %v641
        %v660 = vpack.c.bf16 %v644, %v642
        %v661 = vld [vmem:[%s3] sm:$0xff]
        %v662 = vld [vmem:[%s3 + $0x8] sm:$0xff]
        %v663 = vld [vmem:[%s3 + $0x10] sm:$0xff]
        %v664 = vld [vmem:[%s3 + $0x18] sm:$0xff]
        %v665 = vld [vmem:[%s3 + $0x20] sm:$0xff]
        %v666 = vld [vmem:[%s3 + $0x28] sm:$0xff]
        %v667 = vld [vmem:[%s3 + $0x30] sm:$0xff]
        %v668 = vld [vmem:[%s3 + $0x38] sm:$0xff]
        %v669 = vld [vmem:[%s3 + $0x40] sm:$0xff]
        %v670 = vld [vmem:[%s3 + $0x48] sm:$0xff]
        %v671 = vld [vmem:[%s3 + $0x50] sm:$0xff]
        %v672 = vld [vmem:[%s3 + $0x58] sm:$0xff]
        %v673 = vld [vmem:[%s3 + $0x60] sm:$0xff]
        %v674 = vld [vmem:[%s3 + $0x68] sm:$0xff]
        %v675 = vld [vmem:[%s3 + $0x70] sm:$0xff]
        %v676 = vld [vmem:[%s3 + $0x78] sm:$0xff]
        %v677 = vld [vmem:[%s3 + $0x80] sm:$0xff]
        %v678 = vld [vmem:[%s3 + $0x88] sm:$0xff]
        %v679 = vld [vmem:[%s3 + $0x90] sm:$0xff]
        %v680 = vld [vmem:[%s3 + $0x98] sm:$0xff]
        %v681 = vld [vmem:[%s3 + $0xa0] sm:$0xff]
        %v682 = vld [vmem:[%s3 + $0xa8] sm:$0xff]
        %v683 = vld [vmem:[%s3 + $0xb0] sm:$0xff]
        %v684 = vld [vmem:[%s3 + $0xb8] sm:$0xff]
        %v685 = vld [vmem:[%s3 + $0xc0] sm:$0xff]
        %v686 = vld [vmem:[%s3 + $0xc8] sm:$0xff]
        %v687 = vld [vmem:[%s3 + $0xd0] sm:$0xff]
        %v688 = vld [vmem:[%s3 + $0xd8] sm:$0xff]
        %v689 = vld [vmem:[%s3 + $0xe0] sm:$0xff]
        %v690 = vld [vmem:[%s3 + $0xe8] sm:$0xff]
        %v691 = vld [vmem:[%s3 + $0xf0] sm:$0xff]
        %v692 = vld [vmem:[%s3 + $0xf8] sm:$0xff]
        %v693 = vld [vmem:[%s4] sm:$0x3]
        %v695 = vlaneseq
        %v696 = vshrl.u32 %v695, 7
        %v697 = vsub.s32 0, %v696
        %v698 = vrot.slane %v693, %v697
        %v699 = vlaneseq
        %v700 = vshrl.u32 %v699, 7
        %v701 = vsub.s32 1, %v700
        %v702 = vrot.slane %v693, %v701
        %v737 = vunpack.c.l.b16 %v661
        %v738 = vunpack.c.h.b16 %v661
        %v739 = vunpack.c.l.b16 %v662
        %v740 = vunpack.c.h.b16 %v662
        %v741 = vunpack.c.l.b16 %v663
        %v742 = vunpack.c.h.b16 %v663
        %v743 = vunpack.c.l.b16 %v664
        %v744 = vunpack.c.h.b16 %v664
        %v745 = vunpack.c.l.b16 %v665
        %v746 = vunpack.c.h.b16 %v665
        %v747 = vunpack.c.l.b16 %v666
        %v748 = vunpack.c.h.b16 %v666
        %v749 = vunpack.c.l.b16 %v667
        %v750 = vunpack.c.h.b16 %v667
        %v751 = vunpack.c.l.b16 %v668
        %v752 = vunpack.c.h.b16 %v668
        %v753 = vunpack.c.l.b16 %v669
        %v754 = vunpack.c.h.b16 %v669
        %v755 = vunpack.c.l.b16 %v670
        %v756 = vunpack.c.h.b16 %v670
        %v757 = vunpack.c.l.b16 %v671
        %v758 = vunpack.c.h.b16 %v671
        %v759 = vunpack.c.l.b16 %v672
        %v760 = vunpack.c.h.b16 %v672
        %v761 = vunpack.c.l.b16 %v673
        %v762 = vunpack.c.h.b16 %v673
        %v763 = vunpack.c.l.b16 %v674
        %v764 = vunpack.c.h.b16 %v674
        %v765 = vunpack.c.l.b16 %v675
        %v766 = vunpack.c.h.b16 %v675
        %v767 = vunpack.c.l.b16 %v676
        %v768 = vunpack.c.h.b16 %v676
        %v769 = vunpack.c.l.b16 %v677
        %v770 = vunpack.c.h.b16 %v677
        %v771 = vunpack.c.l.b16 %v678
        %v772 = vunpack.c.h.b16 %v678
        %v773 = vunpack.c.l.b16 %v679
        %v774 = vunpack.c.h.b16 %v679
        %v775 = vunpack.c.l.b16 %v680
        %v776 = vunpack.c.h.b16 %v680
        %v777 = vunpack.c.l.b16 %v681
        %v778 = vunpack.c.h.b16 %v681
        %v779 = vunpack.c.l.b16 %v682
        %v780 = vunpack.c.h.b16 %v682
        %v781 = vunpack.c.l.b16 %v683
        %v782 = vunpack.c.h.b16 %v683
        %v783 = vunpack.c.l.b16 %v684
        %v784 = vunpack.c.h.b16 %v684
        %v785 = vunpack.c.l.b16 %v685
        %v786 = vunpack.c.h.b16 %v685
        %v787 = vunpack.c.l.b16 %v686
        %v788 = vunpack.c.h.b16 %v686
        %v789 = vunpack.c.l.b16 %v687
        %v790 = vunpack.c.h.b16 %v687
        %v791 = vunpack.c.l.b16 %v688
        %v792 = vunpack.c.h.b16 %v688
        %v793 = vunpack.c.l.b16 %v689
        %v794 = vunpack.c.h.b16 %v689
        %v795 = vunpack.c.l.b16 %v690
        %v796 = vunpack.c.h.b16 %v690
        %v797 = vunpack.c.l.b16 %v691
        %v798 = vunpack.c.h.b16 %v691
        %v799 = vunpack.c.l.b16 %v692
        %v800 = vunpack.c.h.b16 %v692
        %v801 = vpack.c.b16 %v739, %v737
        %v802 = vpack.c.b16 %v740, %v738
        %v803 = vpack.c.b16 %v743, %v741
        %v804 = vpack.c.b16 %v744, %v742
        %v805 = vpack.c.b16 %v747, %v745
        %v806 = vpack.c.b16 %v748, %v746
        %v807 = vpack.c.b16 %v751, %v749
        %v808 = vpack.c.b16 %v752, %v750
        %v809 = vpack.c.b16 %v755, %v753
        %v810 = vpack.c.b16 %v756, %v754
        %v811 = vpack.c.b16 %v759, %v757
        %v812 = vpack.c.b16 %v760, %v758
        %v813 = vpack.c.b16 %v763, %v761
        %v814 = vpack.c.b16 %v764, %v762
        %v815 = vpack.c.b16 %v767, %v765
        %v816 = vpack.c.b16 %v768, %v766
        %v817 = vpack.c.b16 %v771, %v769
        %v818 = vpack.c.b16 %v772, %v770
        %v819 = vpack.c.b16 %v775, %v773
        %v820 = vpack.c.b16 %v776, %v774
        %v821 = vpack.c.b16 %v779, %v777
        %v822 = vpack.c.b16 %v780, %v778
        %v823 = vpack.c.b16 %v783, %v781
        %v824 = vpack.c.b16 %v784, %v782
        %v825 = vpack.c.b16 %v787, %v785
        %v826 = vpack.c.b16 %v788, %v786
        %v827 = vpack.c.b16 %v791, %v789
        %v828 = vpack.c.b16 %v792, %v790
        %v829 = vpack.c.b16 %v795, %v793
        %v830 = vpack.c.b16 %v796, %v794
        %v831 = vpack.c.b16 %v799, %v797
        %v832 = vpack.c.b16 %v800, %v798
        %865 = vmatprep.subr.bf16.mxu0 %v802
        %866 = vmatpush1.bf16.msra.mxu0 %v801
        %867 = vmatprep.subr.bf16.mxu0 %v804
        %868 = vmatpush1.bf16.msra.mxu0 %v803
        %869 = vmatprep.subr.bf16.mxu0 %v806
        %870 = vmatpush1.bf16.msra.mxu0 %v805
        %871 = vmatprep.subr.bf16.mxu0 %v808
        %872 = vmatpush1.bf16.msra.mxu0 %v807
        %873 = vmatprep.subr.bf16.mxu0 %v810
        %874 = vmatpush1.bf16.msra.mxu0 %v809
        %875 = vmatprep.subr.bf16.mxu0 %v812
        %876 = vmatpush1.bf16.msra.mxu0 %v811
        %877 = vmatprep.subr.bf16.mxu0 %v814
        %878 = vmatpush1.bf16.msra.mxu0 %v813
        %879 = vmatprep.subr.bf16.mxu0 %v816
        %880 = vmatpush1.bf16.msra.mxu0 %v815
        %881 = vmatprep.subr.bf16.mxu0 %v818
        %882 = vmatpush1.bf16.msra.mxu0 %v817
        %883 = vmatprep.subr.bf16.mxu0 %v820
        %884 = vmatpush1.bf16.msra.mxu0 %v819
        %885 = vmatprep.subr.bf16.mxu0 %v822
        %886 = vmatpush1.bf16.msra.mxu0 %v821
        %887 = vmatprep.subr.bf16.mxu0 %v824
        %888 = vmatpush1.bf16.msra.mxu0 %v823
        %889 = vmatprep.subr.bf16.mxu0 %v826
        %890 = vmatpush1.bf16.msra.mxu0 %v825
        %891 = vmatprep.subr.bf16.mxu0 %v828
        %892 = vmatpush1.bf16.msra.mxu0 %v827
        %893 = vmatprep.subr.bf16.mxu0 %v830
        %894 = vmatpush1.bf16.msra.mxu0 %v829
        %895 = vmatprep.subr.bf16.mxu0 %v832
        %896 = vmatpush1.bf16.msra.mxu0 %v831
        %897 = vmatprep.mubr.bf16.mxu0 %v646
        %898 = vmatmul.mubr.bf16.gmra.mrb[0].mxu0 %v645
        %v899 = vpop.f32.mrb[0].mxu0
        %v900 = vadd.f32 %v698, %v899
        %v901 = vpop.f32.mrb[0].mxu0
        %v902 = vadd.f32 %v702, %v901
        %v903 = vpop.f32.mrb[0].mxu0
        %v904 = vadd.f32 %v698, %v903
        %v905 = vpop.f32.mrb[0].mxu0
        %v906 = vadd.f32 %v702, %v905
        %907 = vmatprep.mubr.bf16.mxu0 %v648
        %908 = vmatmul.mubr.bf16.gmra.mrb[0].mxu0 %v647
        %v909 = vpop.f32.mrb[0].mxu0
        %v910 = vadd.f32 %v698, %v909
        %v911 = vpop.f32.mrb[0].mxu0
        %v912 = vadd.f32 %v702, %v911
        %v913 = vpop.f32.mrb[0].mxu0
        %v914 = vadd.f32 %v698, %v913
        %v915 = vpop.f32.mrb[0].mxu0
        %v916 = vadd.f32 %v702, %v915
        %917 = vmatprep.mubr.bf16.mxu0 %v650
        %918 = vmatmul.mubr.bf16.gmra.mrb[0].mxu0 %v649
        %v919 = vpop.f32.mrb[0].mxu0
        %v920 = vadd.f32 %v698, %v919
        %v921 = vpop.f32.mrb[0].mxu0
        %v922 = vadd.f32 %v702, %v921
        %v923 = vpop.f32.mrb[0].mxu0
        %v924 = vadd.f32 %v698, %v923
        %v925 = vpop.f32.mrb[0].mxu0
        %v926 = vadd.f32 %v702, %v925
        %927 = vmatprep.mubr.bf16.mxu0 %v652
        %928 = vmatmul.mubr.bf16.gmra.mrb[0].mxu0 %v651
        %v929 = vpop.f32.mrb[0].mxu0
        %v930 = vadd.f32 %v698, %v929
        %v931 = vpop.f32.mrb[0].mxu0
        %v932 = vadd.f32 %v702, %v931
        %v933 = vpop.f32.mrb[0].mxu0
        %v934 = vadd.f32 %v698, %v933
        %v935 = vpop.f32.mrb[0].mxu0
        %v936 = vadd.f32 %v702, %v935
        %937 = vmatprep.mubr.bf16.mxu0 %v654
        %938 = vmatmul.mubr.bf16.gmra.mrb[0].mxu0 %v653
        %v939 = vpop.f32.mrb[0].mxu0
        %v940 = vadd.f32 %v698, %v939
        %v941 = vpop.f32.mrb[0].mxu0
        %v942 = vadd.f32 %v702, %v941
        %v943 = vpop.f32.mrb[0].mxu0
        %v944 = vadd.f32 %v698, %v943
        %v945 = vpop.f32.mrb[0].mxu0
        %v946 = vadd.f32 %v702, %v945
        %947 = vmatprep.mubr.bf16.mxu0 %v656
        %948 = vmatmul.mubr.bf16.gmra.mrb[0].mxu0 %v655
        %v949 = vpop.f32.mrb[0].mxu0
        %v950 = vadd.f32 %v698, %v949
        %v951 = vpop.f32.mrb[0].mxu0
        %v952 = vadd.f32 %v702, %v951
        %v953 = vpop.f32.mrb[0].mxu0
        %v954 = vadd.f32 %v698, %v953
        %v955 = vpop.f32.mrb[0].mxu0
        %v956 = vadd.f32 %v702, %v955
        %957 = vmatprep.mubr.bf16.mxu0 %v658
        %958 = vmatmul.mubr.bf16.gmra.mrb[0].mxu0 %v657
        %v959 = vpop.f32.mrb[0].mxu0
        %v960 = vadd.f32 %v698, %v959
        %v961 = vpop.f32.mrb[0].mxu0
        %v962 = vadd.f32 %v702, %v961
        %v963 = vpop.f32.mrb[0].mxu0
        %v964 = vadd.f32 %v698, %v963
        %v965 = vpop.f32.mrb[0].mxu0
        %v966 = vadd.f32 %v702, %v965
        %967 = vmatprep.mubr.bf16.mxu0 %v660
        %968 = vmatmul.mubr.bf16.gmra.mrb[0].mxu0 %v659
        %v969 = vpop.f32.mrb[0].mxu0
        %v970 = vadd.f32 %v698, %v969
        %v971 = vpop.f32.mrb[0].mxu0
        %v972 = vadd.f32 %v702, %v971
        %v973 = vpop.f32.mrb[0].mxu0
        %v974 = vadd.f32 %v698, %v973
        %v975 = vpop.f32.mrb[0].mxu0
        %v976 = vadd.f32 %v702, %v975
        %977 = vdwg.mxu0
        %v978 = vmax.f32 %v900, 0.0
        %v979 = vmax.f32 %v902, 0.0
        %v980 = vmax.f32 %v904, 0.0
        %v981 = vmax.f32 %v906, 0.0
        %v982 = vmax.f32 %v910, 0.0
        %v983 = vmax.f32 %v912, 0.0
        %v984 = vmax.f32 %v914, 0.0
        %v985 = vmax.f32 %v916, 0.0
        %v986 = vmax.f32 %v920, 0.0
        %v987 = vmax.f32 %v922, 0.0
        %v988 = vmax.f32 %v924, 0.0
        %v989 = vmax.f32 %v926, 0.0
        %v990 = vmax.f32 %v930, 0.0
        %v991 = vmax.f32 %v932, 0.0
        %v992 = vmax.f32 %v934, 0.0
        %v993 = vmax.f32 %v936, 0.0
        %v994 = vmax.f32 %v940, 0.0
        %v995 = vmax.f32 %v942, 0.0
        %v996 = vmax.f32 %v944, 0.0
        %v997 = vmax.f32 %v946, 0.0
        %v998 = vmax.f32 %v950, 0.0
        %v999 = vmax.f32 %v952, 0.0
        %v1000 = vmax.f32 %v954, 0.0
        %v1001 = vmax.f32 %v956, 0.0
        %v1002 = vmax.f32 %v960, 0.0
        %v1003 = vmax.f32 %v962, 0.0
        %v1004 = vmax.f32 %v964, 0.0
        %v1005 = vmax.f32 %v966, 0.0
        %v1006 = vmax.f32 %v970, 0.0
        %v1007 = vmax.f32 %v972, 0.0
        %v1008 = vmax.f32 %v974, 0.0
        %v1009 = vmax.f32 %v976, 0.0
        %v1010 = vpack.c.bf16 %v980, %v978
        %v1011 = vpack.c.bf16 %v981, %v979
        %v1012 = vpack.c.bf16 %v984, %v982
        %v1013 = vpack.c.bf16 %v985, %v983
        %v1014 = vpack.c.bf16 %v988, %v986
        %v1015 = vpack.c.bf16 %v989, %v987
        %v1016 = vpack.c.bf16 %v992, %v990
        %v1017 = vpack.c.bf16 %v993, %v991
        %v1018 = vpack.c.bf16 %v996, %v994
        %v1019 = vpack.c.bf16 %v997, %v995
        %v1020 = vpack.c.bf16 %v1000, %v998
        %v1021 = vpack.c.bf16 %v1001, %v999
        %v1022 = vpack.c.bf16 %v1004, %v1002
        %v1023 = vpack.c.bf16 %v1005, %v1003
        %v1024 = vpack.c.bf16 %v1008, %v1006
        %v1025 = vpack.c.bf16 %v1009, %v1007
        %v1026 = vld [vmem:[#allocation2] sm:$0xf]
        %v1027 = vld [vmem:[#allocation2 + $0x4] sm:$0xf]
        %v1028 = vld [vmem:[#allocation2 + $0x8] sm:$0xf]
        %v1029 = vld [vmem:[#allocation2 + $0xc] sm:$0xf]
        %v1030 = vld [vmem:[#allocation2 + $0x10] sm:$0xf]
        %v1031 = vld [vmem:[#allocation2 + $0x14] sm:$0xf]
        %v1032 = vld [vmem:[#allocation2 + $0x18] sm:$0xf]
        %v1033 = vld [vmem:[#allocation2 + $0x1c] sm:$0xf]
        %v1034 = vld [vmem:[#allocation2 + $0x20] sm:$0xf]
        %v1035 = vld [vmem:[#allocation2 + $0x24] sm:$0xf]
        %v1036 = vld [vmem:[#allocation2 + $0x28] sm:$0xf]
        %v1037 = vld [vmem:[#allocation2 + $0x2c] sm:$0xf]
        %v1038 = vld [vmem:[#allocation2 + $0x30] sm:$0xf]
        %v1039 = vld [vmem:[#allocation2 + $0x34] sm:$0xf]
        %v1040 = vld [vmem:[#allocation2 + $0x38] sm:$0xf]
        %v1041 = vld [vmem:[#allocation2 + $0x3c] sm:$0xf]
        %v1042 = vld [vmem:[#allocation2 + $0x40] sm:$0xf]
        %v1043 = vld [vmem:[#allocation2 + $0x44] sm:$0xf]
        %v1044 = vld [vmem:[#allocation2 + $0x48] sm:$0xf]
        %v1045 = vld [vmem:[#allocation2 + $0x4c] sm:$0xf]
        %v1046 = vld [vmem:[#allocation2 + $0x50] sm:$0xf]
        %v1047 = vld [vmem:[#allocation2 + $0x54] sm:$0xf]
        %v1048 = vld [vmem:[#allocation2 + $0x58] sm:$0xf]
        %v1049 = vld [vmem:[#allocation2 + $0x5c] sm:$0xf]
        %v1050 = vld [vmem:[#allocation2 + $0x60] sm:$0xf]
        %v1051 = vld [vmem:[#allocation2 + $0x64] sm:$0xf]
        %v1052 = vld [vmem:[#allocation2 + $0x68] sm:$0xf]
        %v1053 = vld [vmem:[#allocation2 + $0x6c] sm:$0xf]
        %v1054 = vld [vmem:[#allocation2 + $0x70] sm:$0xf]
        %v1055 = vld [vmem:[#allocation2 + $0x74] sm:$0xf]
        %v1056 = vld [vmem:[#allocation2 + $0x78] sm:$0xf]
        %v1057 = vld [vmem:[#allocation2 + $0x7c] sm:$0xf]
        %v1058 = vld [vmem:[%s6] sm:$0x1]
        %v1060 = vlaneseq
        %v1061 = vshrl.u32 %v1060, 7
        %v1062 = vsub.s32 0, %v1061
        %v1063 = vrot.slane %v1058, %v1062
        %v1097 = vunpack.c.l.b16 %v1026
        %v1098 = vunpack.c.l.b16 %v1027
        %v1099 = vunpack.c.l.b16 %v1028
        %v1100 = vunpack.c.l.b16 %v1029
        %v1101 = vunpack.c.l.b16 %v1030
        %v1102 = vunpack.c.l.b16 %v1031
        %v1103 = vunpack.c.l.b16 %v1032
        %v1104 = vunpack.c.l.b16 %v1033
        %v1105 = vunpack.c.l.b16 %v1034
        %v1106 = vunpack.c.l.b16 %v1035
        %v1107 = vunpack.c.l.b16 %v1036
        %v1108 = vunpack.c.l.b16 %v1037
        %v1109 = vunpack.c.l.b16 %v1038
        %v1110 = vunpack.c.l.b16 %v1039
        %v1111 = vunpack.c.l.b16 %v1040
        %v1112 = vunpack.c.l.b16 %v1041
        %v1113 = vunpack.c.l.b16 %v1042
        %v1114 = vunpack.c.l.b16 %v1043
        %v1115 = vunpack.c.l.b16 %v1044
        %v1116 = vunpack.c.l.b16 %v1045
        %v1117 = vunpack.c.l.b16 %v1046
        %v1118 = vunpack.c.l.b16 %v1047
        %v1119 = vunpack.c.l.b16 %v1048
        %v1120 = vunpack.c.l.b16 %v1049
        %v1121 = vunpack.c.l.b16 %v1050
        %v1122 = vunpack.c.l.b16 %v1051
        %v1123 = vunpack.c.l.b16 %v1052
        %v1124 = vunpack.c.l.b16 %v1053
        %v1125 = vunpack.c.l.b16 %v1054
        %v1126 = vunpack.c.l.b16 %v1055
        %v1127 = vunpack.c.l.b16 %v1056
        %v1128 = vunpack.c.l.b16 %v1057
        %v1129 = vpack.c.b16 %v1098, %v1097
        %v1130 = vpack.c.b16 %v1100, %v1099
        %v1131 = vpack.c.b16 %v1102, %v1101
        %v1132 = vpack.c.b16 %v1104, %v1103
        %v1133 = vpack.c.b16 %v1106, %v1105
        %v1134 = vpack.c.b16 %v1108, %v1107
        %v1135 = vpack.c.b16 %v1110, %v1109
        %v1136 = vpack.c.b16 %v1112, %v1111
        %v1137 = vpack.c.b16 %v1114, %v1113
        %v1138 = vpack.c.b16 %v1116, %v1115
        %v1139 = vpack.c.b16 %v1118, %v1117
        %v1140 = vpack.c.b16 %v1120, %v1119
        %v1141 = vpack.c.b16 %v1122, %v1121
        %v1142 = vpack.c.b16 %v1124, %v1123
        %v1143 = vpack.c.b16 %v1126, %v1125
        %v1144 = vpack.c.b16 %v1128, %v1127
        %1161 = vmatprep.subr.bf16.mxu0 0
        %1162 = vmatpush1.bf16.msra.mxu0 %v1129
        %1163 = vmatprep.subr.bf16.mxu0 0
        %1164 = vmatpush1.bf16.msra.mxu0 %v1130
        %1165 = vmatprep.subr.bf16.mxu0 0
        %1166 = vmatpush1.bf16.msra.mxu0 %v1131
        %1167 = vmatprep.subr.bf16.mxu0 0
        %1168 = vmatpush1.bf16.msra.mxu0 %v1132
        %1169 = vmatprep.subr.bf16.mxu0 0
        %1170 = vmatpush1.bf16.msra.mxu0 %v1133
        %1171 = vmatprep.subr.bf16.mxu0 0
        %1172 = vmatpush1.bf16.msra.mxu0 %v1134
        %1173 = vmatprep.subr.bf16.mxu0 0
        %1174 = vmatpush1.bf16.msra.mxu0 %v1135
        %1175 = vmatprep.subr.bf16.mxu0 0
        %1176 = vmatpush1.bf16.msra.mxu0 %v1136
        %1177 = vmatprep.subr.bf16.mxu0 0
        %1178 = vmatpush1.bf16.msra.mxu0 %v1137
        %1179 = vmatprep.subr.bf16.mxu0 0
        %1180 = vmatpush1.bf16.msra.mxu0 %v1138
        %1181 = vmatprep.subr.bf16.mxu0 0
        %1182 = vmatpush1.bf16.msra.mxu0 %v1139
        %1183 = vmatprep.subr.bf16.mxu0 0
        %1184 = vmatpush1.bf16.msra.mxu0 %v1140
        %1185 = vmatprep.subr.bf16.mxu0 0
        %1186 = vmatpush1.bf16.msra.mxu0 %v1141
        %1187 = vmatprep.subr.bf16.mxu0 0
        %1188 = vmatpush1.bf16.msra.mxu0 %v1142
        %1189 = vmatprep.subr.bf16.mxu0 0
        %1190 = vmatpush1.bf16.msra.mxu0 %v1143
        %1191 = vmatprep.subr.bf16.mxu0 0
        %1192 = vmatpush1.bf16.msra.mxu0 %v1144
        %1193 = vmatprep.mubr.bf16.mxu0 %v1011
        %1194 = vmatmul.mubr.bf16.gmra.mrb[0].mxu0 %v1010
        %v1195 = vpop.f32.mrb[0].mxu0
        %v1196 = vadd.f32 %v1063, %v1195
        %v1197 = vpop.f32.mrb[0].mxu0
        %v1198 = vpop.f32.mrb[0].mxu0
        %v1199 = vadd.f32 %v1063, %v1198
        %v1200 = vpop.f32.mrb[0].mxu0
        %1201 = vmatprep.mubr.bf16.mxu0 %v1013
        %1202 = vmatmul.mubr.bf16.gmra.mrb[0].mxu0 %v1012
        %v1203 = vpop.f32.mrb[0].mxu0
        %v1204 = vadd.f32 %v1063, %v1203
        %v1205 = vpop.f32.mrb[0].mxu0
        %v1206 = vpop.f32.mrb[0].mxu0
        %v1207 = vadd.f32 %v1063, %v1206
        %v1208 = vpop.f32.mrb[0].mxu0
        %1209 = vmatprep.mubr.bf16.mxu0 %v1015
        %1210 = vmatmul.mubr.bf16.gmra.mrb[0].mxu0 %v1014
        %v1211 = vpop.f32.mrb[0].mxu0
        %v1212 = vadd.f32 %v1063, %v1211
        %v1213 = vpop.f32.mrb[0].mxu0
        %v1214 = vpop.f32.mrb[0].mxu0
        %v1215 = vadd.f32 %v1063, %v1214
        %v1216 = vpop.f32.mrb[0].mxu0
        %1217 = vmatprep.mubr.bf16.mxu0 %v1017
        %1218 = vmatmul.mubr.bf16.gmra.mrb[0].mxu0 %v1016
        %v1219 = vpop.f32.mrb[0].mxu0
        %v1220 = vadd.f32 %v1063, %v1219
        %v1221 = vpop.f32.mrb[0].mxu0
        %v1222 = vpop.f32.mrb[0].mxu0
        %v1223 = vadd.f32 %v1063, %v1222
        %v1224 = vpop.f32.mrb[0].mxu0
        %1225 = vmatprep.mubr.bf16.mxu0 %v1019
        %1226 = vmatmul.mubr.bf16.gmra.mrb[0].mxu0 %v1018
        %v1227 = vpop.f32.mrb[0].mxu0
        %v1228 = vadd.f32 %v1063, %v1227
        %v1229 = vpop.f32.mrb[0].mxu0
        %v1230 = vpop.f32.mrb[0].mxu0
        %v1231 = vadd.f32 %v1063, %v1230
        %v1232 = vpop.f32.mrb[0].mxu0
        %1233 = vmatprep.mubr.bf16.mxu0 %v1021
        %1234 = vmatmul.mubr.bf16.gmra.mrb[0].mxu0 %v1020
        %v1235 = vpop.f32.mrb[0].mxu0
        %v1236 = vadd.f32 %v1063, %v1235
        %v1237 = vpop.f32.mrb[0].mxu0
        %v1238 = vpop.f32.mrb[0].mxu0
        %v1239 = vadd.f32 %v1063, %v1238
        %v1240 = vpop.f32.mrb[0].mxu0
        %1241 = vmatprep.mubr.bf16.mxu0 %v1023
        %1242 = vmatmul.mubr.bf16.gmra.mrb[0].mxu0 %v1022
        %v1243 = vpop.f32.mrb[0].mxu0
        %v1244 = vadd.f32 %v1063, %v1243
        %v1245 = vpop.f32.mrb[0].mxu0
        %v1246 = vpop.f32.mrb[0].mxu0
        %v1247 = vadd.f32 %v1063, %v1246
        %v1248 = vpop.f32.mrb[0].mxu0
        %1249 = vmatprep.mubr.bf16.mxu0 %v1025
        %1250 = vmatmul.mubr.bf16.gmra.mrb[0].mxu0 %v1024
        %v1251 = vpop.f32.mrb[0].mxu0
        %v1252 = vadd.f32 %v1063, %v1251
        %v1253 = vpop.f32.mrb[0].mxu0
        %v1254 = vpop.f32.mrb[0].mxu0
        %v1255 = vadd.f32 %v1063, %v1254
        %v1256 = vpop.f32.mrb[0].mxu0
        %1257 = vdwg.mxu0
        %v1258 = vmax.f32 %v1196, 0.0
        %v1259 = vmax.f32 %v1199, 0.0
        %v1260 = vmax.f32 %v1204, 0.0
        %v1261 = vmax.f32 %v1207, 0.0
        %v1262 = vmax.f32 %v1212, 0.0
        %v1263 = vmax.f32 %v1215, 0.0
        %v1264 = vmax.f32 %v1220, 0.0
        %v1265 = vmax.f32 %v1223, 0.0
        %v1266 = vmax.f32 %v1228, 0.0
        %v1267 = vmax.f32 %v1231, 0.0
        %v1268 = vmax.f32 %v1236, 0.0
        %v1269 = vmax.f32 %v1239, 0.0
        %v1270 = vmax.f32 %v1244, 0.0
        %v1271 = vmax.f32 %v1247, 0.0
        %v1272 = vmax.f32 %v1252, 0.0
        %v1273 = vmax.f32 %v1255, 0.0
        %v1274 = vpack.c.bf16 %v1259, %v1258
        %v1275 = vpack.c.bf16 %v1261, %v1260
        %v1276 = vpack.c.bf16 %v1263, %v1262
        %v1277 = vpack.c.bf16 %v1265, %v1264
        %v1278 = vpack.c.bf16 %v1267, %v1266
        %v1279 = vpack.c.bf16 %v1269, %v1268
        %v1280 = vpack.c.bf16 %v1271, %v1270
        %v1281 = vpack.c.bf16 %v1273, %v1272
        %v1282 = vld [vmem:[#allocation4] sm:$0xf]
        %v1283 = vld [vmem:[#allocation4 + $0x4] sm:$0xf]
        %v1284 = vld [vmem:[#allocation4 + $0x8] sm:$0xf]
        %v1285 = vld [vmem:[#allocation4 + $0xc] sm:$0xf]
        %v1286 = vld [vmem:[#allocation4 + $0x10] sm:$0xf]
        %v1287 = vld [vmem:[#allocation4 + $0x14] sm:$0xf]
        %v1288 = vld [vmem:[#allocation4 + $0x18] sm:$0xf]
        %v1289 = vld [vmem:[#allocation4 + $0x1c] sm:$0xf]
        %v1290 = vld [vmem:[#allocation4 + $0x20] sm:$0xf]
        %v1291 = vld [vmem:[#allocation4 + $0x24] sm:$0xf]
        %v1292 = vld [vmem:[#allocation4 + $0x28] sm:$0xf]
        %v1293 = vld [vmem:[#allocation4 + $0x2c] sm:$0xf]
        %v1294 = vld [vmem:[#allocation4 + $0x30] sm:$0xf]
        %v1295 = vld [vmem:[#allocation4 + $0x34] sm:$0xf]
        %v1296 = vld [vmem:[#allocation4 + $0x38] sm:$0xf]
        %v1297 = vld [vmem:[#allocation4 + $0x3c] sm:$0xf]
        %v1298 = vld [vmem:[%s8] sm:$0x1]
        %v1300 = vlaneseq
        %v1301 = vshrl.u32 %v1300, 7
        %v1302 = vsub.s32 0, %v1301
        %v1303 = vrot.slane %v1298, %v1302
        %v1321 = vunpack.c.l.b16 %v1282
        %v1322 = vunpack.c.l.b16 %v1283
        %v1323 = vunpack.c.l.b16 %v1284
        %v1324 = vunpack.c.l.b16 %v1285
        %v1325 = vunpack.c.l.b16 %v1286
        %v1326 = vunpack.c.l.b16 %v1287
        %v1327 = vunpack.c.l.b16 %v1288
        %v1328 = vunpack.c.l.b16 %v1289
        %v1329 = vunpack.c.l.b16 %v1290
        %v1330 = vunpack.c.l.b16 %v1291
        %v1331 = vunpack.c.l.b16 %v1292
        %v1332 = vunpack.c.l.b16 %v1293
        %v1333 = vunpack.c.l.b16 %v1294
        %v1334 = vunpack.c.l.b16 %v1295
        %v1335 = vunpack.c.l.b16 %v1296
        %v1336 = vunpack.c.l.b16 %v1297
        %v1337 = vpack.c.b16 %v1322, %v1321
        %v1338 = vpack.c.b16 %v1324, %v1323
        %v1339 = vpack.c.b16 %v1326, %v1325
        %v1340 = vpack.c.b16 %v1328, %v1327
        %v1341 = vpack.c.b16 %v1330, %v1329
        %v1342 = vpack.c.b16 %v1332, %v1331
        %v1343 = vpack.c.b16 %v1334, %v1333
        %v1344 = vpack.c.b16 %v1336, %v1335
        %1353 = vmatprep.subr.bf16.mxu0 0
        %1354 = vmatpush1.bf16.msra.mxu0 %v1337
        %1355 = vmatprep.subr.bf16.mxu0 0
        %1356 = vmatpush1.bf16.msra.mxu0 %v1338
        %1357 = vmatprep.subr.bf16.mxu0 0
        %1358 = vmatpush1.bf16.msra.mxu0 %v1339
        %1359 = vmatprep.subr.bf16.mxu0 0
        %1360 = vmatpush1.bf16.msra.mxu0 %v1340
        %1361 = vmatprep.subr.bf16.mxu0 0
        %1362 = vmatpush1.bf16.msra.mxu0 %v1341
        %1363 = vmatprep.subr.bf16.mxu0 0
        %1364 = vmatpush1.bf16.msra.mxu0 %v1342
        %1365 = vmatprep.subr.bf16.mxu0 0
        %1366 = vmatpush1.bf16.msra.mxu0 %v1343
        %1367 = vmatprep.subr.bf16.mxu0 0
        %1368 = vmatpush1.bf16.msra.mxu0 %v1344
        %1369 = vmatprep.subr.bf16.mxu0 0
        %1370 = vmatpush1.bf16.msra.mxu0 0
        %1371 = vmatprep.subr.bf16.mxu0 0
        %1372 = vmatpush1.bf16.msra.mxu0 0
        %1373 = vmatprep.subr.bf16.mxu0 0
        %1374 = vmatpush1.bf16.msra.mxu0 0
        %1375 = vmatprep.subr.bf16.mxu0 0
        %1376 = vmatpush1.bf16.msra.mxu0 0
        %1377 = vmatprep.subr.bf16.mxu0 0
        %1378 = vmatpush1.bf16.msra.mxu0 0
        %1379 = vmatprep.subr.bf16.mxu0 0
        %1380 = vmatpush1.bf16.msra.mxu0 0
        %1381 = vmatprep.subr.bf16.mxu0 0
        %1382 = vmatpush1.bf16.msra.mxu0 0
        %1383 = vmatprep.subr.bf16.mxu0 0
        %1384 = vmatpush1.bf16.msra.mxu0 0
        %1385 = vmatprep.mubr.bf16.mxu0 0
        %1386 = vmatmul.mubr.bf16.gmra.mrb[0].mxu0 %v1274
        %v1387 = vpop.f32.mrb[0].mxu0
        %v1388 = vadd.f32 %v1303, %v1387
        %v1389 = vpop.f32.mrb[0].mxu0
        %v1390 = vpop.f32.mrb[0].mxu0
        %v1391 = vadd.f32 %v1303, %v1390
        %v1392 = vpop.f32.mrb[0].mxu0
        %1393 = vmatprep.mubr.bf16.mxu0 0
        %1394 = vmatmul.mubr.bf16.gmra.mrb[0].mxu0 %v1275
        %v1395 = vpop.f32.mrb[0].mxu0
        %v1396 = vadd.f32 %v1303, %v1395
        %v1397 = vpop.f32.mrb[0].mxu0
        %v1398 = vpop.f32.mrb[0].mxu0
        %v1399 = vadd.f32 %v1303, %v1398
        %v1400 = vpop.f32.mrb[0].mxu0
        %1401 = vmatprep.mubr.bf16.mxu0 0
        %1402 = vmatmul.mubr.bf16.gmra.mrb[0].mxu0 %v1276
        %v1403 = vpop.f32.mrb[0].mxu0
        %v1404 = vadd.f32 %v1303, %v1403
        %v1405 = vpop.f32.mrb[0].mxu0
        %v1406 = vpop.f32.mrb[0].mxu0
        %v1407 = vadd.f32 %v1303, %v1406
        %v1408 = vpop.f32.mrb[0].mxu0
        %1409 = vmatprep.mubr.bf16.mxu0 0
        %1410 = vmatmul.mubr.bf16.gmra.mrb[0].mxu0 %v1277
        %v1411 = vpop.f32.mrb[0].mxu0
        %v1412 = vadd.f32 %v1303, %v1411
        %v1413 = vpop.f32.mrb[0].mxu0
        %v1414 = vpop.f32.mrb[0].mxu0
        %v1415 = vadd.f32 %v1303, %v1414
        %v1416 = vpop.f32.mrb[0].mxu0
        %1417 = vmatprep.mubr.bf16.mxu0 0
        %1418 = vmatmul.mubr.bf16.gmra.mrb[0].mxu0 %v1278
        %v1419 = vpop.f32.mrb[0].mxu0
        %v1420 = vadd.f32 %v1303, %v1419
        %v1421 = vpop.f32.mrb[0].mxu0
        %v1422 = vpop.f32.mrb[0].mxu0
        %v1423 = vadd.f32 %v1303, %v1422
        %v1424 = vpop.f32.mrb[0].mxu0
        %1425 = vmatprep.mubr.bf16.mxu0 0
        %1426 = vmatmul.mubr.bf16.gmra.mrb[0].mxu0 %v1279
        %v1427 = vpop.f32.mrb[0].mxu0
        %v1428 = vadd.f32 %v1303, %v1427
        %v1429 = vpop.f32.mrb[0].mxu0
        %v1430 = vpop.f32.mrb[0].mxu0
        %v1431 = vadd.f32 %v1303, %v1430
        %v1432 = vpop.f32.mrb[0].mxu0
        %1433 = vmatprep.mubr.bf16.mxu0 0
        %1434 = vmatmul.mubr.bf16.gmra.mrb[0].mxu0 %v1280
        %v1435 = vpop.f32.mrb[0].mxu0
        %v1436 = vadd.f32 %v1303, %v1435
        %v1437 = vpop.f32.mrb[0].mxu0
        %v1438 = vpop.f32.mrb[0].mxu0
        %v1439 = vadd.f32 %v1303, %v1438
        %v1440 = vpop.f32.mrb[0].mxu0
        %1441 = vmatprep.mubr.bf16.mxu0 0
        %1442 = vmatmul.mubr.bf16.gmra.mrb[0].mxu0 %v1281
        %v1443 = vpop.f32.mrb[0].mxu0
        %v1444 = vadd.f32 %v1303, %v1443
        %v1445 = vpop.f32.mrb[0].mxu0
        %v1446 = vpop.f32.mrb[0].mxu0
        %v1447 = vadd.f32 %v1303, %v1446
        %v1448 = vpop.f32.mrb[0].mxu0
        %1449 = vdwg.mxu0
        %v1450 = vpack.c.bf16 %v1391, %v1388
        %v1451 = vpack.c.bf16 %v1399, %v1396
        %v1452 = vpack.c.bf16 %v1407, %v1404
        %v1453 = vpack.c.bf16 %v1415, %v1412
        %v1454 = vpack.c.bf16 %v1423, %v1420
        %v1455 = vpack.c.bf16 %v1431, %v1428
        %v1456 = vpack.c.bf16 %v1439, %v1436
        %v1457 = vpack.c.bf16 %v1447, %v1444
        %v1466 = vunpack.c.l.b16 %v1450
        %v1467 = vunpack.c.h.b16 %v1450
        %v1468 = vunpack.c.l.b16 %v1451
        %v1469 = vunpack.c.h.b16 %v1451
        %v1470 = vunpack.c.l.b16 %v1452
        %v1471 = vunpack.c.h.b16 %v1452
        %v1472 = vunpack.c.l.b16 %v1453
        %v1473 = vunpack.c.h.b16 %v1453
        %v1474 = vunpack.c.l.b16 %v1454
        %v1475 = vunpack.c.h.b16 %v1454
        %v1476 = vunpack.c.l.b16 %v1455
        %v1477 = vunpack.c.h.b16 %v1455
        %v1478 = vunpack.c.l.b16 %v1456
        %v1479 = vunpack.c.h.b16 %v1456
        %v1480 = vunpack.c.l.b16 %v1457
        %v1481 = vunpack.c.h.b16 %v1457
        %v1482 = vpack.c.b16 %v1466, %v1466
        %v1483 = vpack.c.b16 %v1467, %v1467
        %v1484 = vpack.c.b16 %v1468, %v1468
        %v1485 = vpack.c.b16 %v1469, %v1469
        %v1486 = vpack.c.b16 %v1470, %v1470
        %v1487 = vpack.c.b16 %v1471, %v1471
        %v1488 = vpack.c.b16 %v1472, %v1472
        %v1489 = vpack.c.b16 %v1473, %v1473
        %v1490 = vpack.c.b16 %v1474, %v1474
        %v1491 = vpack.c.b16 %v1475, %v1475
        %v1492 = vpack.c.b16 %v1476, %v1476
        %v1493 = vpack.c.b16 %v1477, %v1477
        %v1494 = vpack.c.b16 %v1478, %v1478
        %v1495 = vpack.c.b16 %v1479, %v1479
        %v1496 = vpack.c.b16 %v1480, %v1480
        %v1497 = vpack.c.b16 %v1481, %v1481
        %1514 = vst [vmem:[%s364] sm:$0xf] %v1482
        %1515 = vst [vmem:[%s364 + $0x4] sm:$0xf] %v1483
        %1516 = vst [vmem:[%s364 + $0x8] sm:$0xf] %v1484
        %1517 = vst [vmem:[%s364 + $0xc] sm:$0xf] %v1485
        %1518 = vst [vmem:[%s364 + $0x10] sm:$0xf] %v1486
        %1519 = vst [vmem:[%s364 + $0x14] sm:$0xf] %v1487
        %1520 = vst [vmem:[%s364 + $0x18] sm:$0xf] %v1488
        %1521 = vst [vmem:[%s364 + $0x1c] sm:$0xf] %v1489
        %1522 = vst [vmem:[%s364 + $0x20] sm:$0xf] %v1490
        %1523 = vst [vmem:[%s364 + $0x24] sm:$0xf] %v1491
        %1524 = vst [vmem:[%s364 + $0x28] sm:$0xf] %v1492
        %1525 = vst [vmem:[%s364 + $0x2c] sm:$0xf] %v1493
        %1526 = vst [vmem:[%s364 + $0x30] sm:$0xf] %v1494
        %1527 = vst [vmem:[%s364 + $0x34] sm:$0xf] %v1495
        %1528 = vst [vmem:[%s364 + $0x38] sm:$0xf] %v1496
        %1529 = vst [vmem:[%s364 + $0x3c] sm:$0xf] %v1497
        %s1530 = smul.u32 16, %s22
        %p1531 = scmp.lt.s32.totalorder %s1530, 31
        %s1532 = scalar_select %p1531, %s1530, 31
        %s1533 = smul.addr %s1532, 4
        %s1534 = scalar_lea.vmem %s9, %s1533
        // Predicated region
        $region65: #{dqn_forward.1} parent=55 // pred_check
          %p1535 = pneg %p234
        $region66: #{dqn_forward.1} parent=55 // pred_check_branch
          %1537 = sbr.rel (%p1535) target = $region68
        $region67: #{dqn_forward.1} parent=55 // pred_region
          %s1538 = smul.u32 16, %s22
        $region68: #{dqn_forward.1} parent=55 // pred_fallthru
          _
      $region56: #{dqn_forward.1} parent=5 // pred_fallthru
        _
      %p1539 = scmp.le.s32.totalorder 2, %s17
      // Predicated region
      $region69: #{dqn_forward.1} parent=5 // pred_check
        %p1540 = pneg %p1539
      $region70: #{dqn_forward.1} parent=5 // pred_check_branch
        %1542 = sbr.rel (%p1540) target = $region72
      $region71: #{dqn_forward.1} parent=5 // pred_region
        %s1543 = ssub.s32 %s17, 2
        // Predicated region
        $region73: #{dqn_forward.1} parent=71 // pred_check
          %p1544 = pneg %p240
        $region74: #{dqn_forward.1} parent=71 // pred_check_branch
          %1546 = sbr.rel (%p1544) target = $region76
        $region75: #{dqn_forward.1} parent=71 // pred_region
          %s1547 = smul.u32 16, %s23
          %p1548 = scmp.lt.s32.totalorder %s1547, 31
          %s1549 = scalar_select %p1548, %s1547, 31
          %s1550 = smul.addr %s1549, 4
          %s1551 = scalar_lea.vmem %s9, %s1550
        $region76: #{dqn_forward.1} parent=71 // pred_fallthru
          _
      $region72: #{dqn_forward.1} parent=5 // pred_fallthru
        _
    $region6: #{dqn_forward.1} parent=1 // loop_footer
      %s21 = sadd.s32 1, %s17
    $region7: #{dqn_forward.1} parent=1 // loop_footer_branch
      %16 = sbr.rel target = $region3
    $region8: #{dqn_forward.1} parent=1 // loop_exit
      _
    %1552 = vsyncpa [#allocation3], 1
    %s1553 = scalar_lea.sflag [#allocation3], 1
    %1554 = vsyncpa %s1553, 1
    %1555 = vsyncpa [#allocation5], 1

</llo_original>
